<compile_context>
chip_gen: v7x
topology: tpu7x:2x2x1
jax: 0.10.0
libtpu: 0.0.40
codegen_flags: <defaults>
</compile_context>

<pallas_src>
import functools

import jax
import jax.numpy as jnp
import numpy as np
from jax import lax
from jax.experimental import pallas as pl
from jax.experimental.pallas import tpu as pltpu


def _bilstm_kernel(x_ref, len_ref, wih_ref, whh_ref, b_ref, wcls_ref, bcls_ref,
                   scores_ref, *, T, B, H):
    """Fused bidirectional LSTM + classification head (single pallas_call, no grid).

    x_ref:      (T*B, E)   time-major flattened embeddings
    len_ref:    (B, 1)     int32 sequence lengths (0 for padded batch rows)
    wih_ref:    (E, 8H)    [fwd i,f,g,o | bwd i,f,g,o] input weights
    whh_ref:    (2H, 8H)   block-diagonal [whh_f, 0 ; 0, whh_b]
    b_ref:      (1, 8H)    folded b_ih + b_hh for both directions
    wcls_ref:   (2H, Kp)   classifier weights (fwd rows then bwd rows), lane-padded
    bcls_ref:   (1, Kp)    classifier bias, lane-padded
    scores_ref: (T*B, Kp)  lane-dense scores output
    """
    G4 = 4 * H
    G8 = 8 * H
    lengths = len_ref[...]                                        # (B, 1) int32

    # ---- hoisted input projection (both directions, bias folded): one matmul,
    #      kept as a value (no VMEM scratch round-trip).
    pre = (jnp.dot(x_ref[...], wih_ref[...],
                   preferred_element_type=jnp.float32)
           + b_ref[...]).reshape(T, B, G8)                        # (T, B, 8H)

    # ---- hoisted masks (JAX does not CSE broadcast_in_dim; build once) ----
    t_iota = lax.broadcasted_iota(jnp.int32, (T, B, 1), 0)
    mask_all = t_iota < lengths[None]                             # (T, B, 1) bool
    lane = lax.broadcasted_iota(jnp.int32, (B, G8), 1)
    tanh_lanes = (((lane >= 2 * H) & (lane < 3 * H))              # fwd g-gate lanes
                  | ((lane >= G4 + 2 * H) & (lane < G4 + 3 * H)))  # bwd g-gate lanes

    whh = whh_ref[...]                                            # (2H, 8H)

    h_f = jnp.zeros((B, H), jnp.float32)
    c_f = jnp.zeros((B, H), jnp.float32)
    h_b = jnp.zeros((B, H), jnp.float32)
    c_b = jnp.zeros((B, H), jnp.float32)
    out_f = [None] * T
    out_b = [None] * T

    # ---- merged recurrence: fwd step t and bwd step T-1-t in one unrolled iteration.
    for t in range(T):
        tf, tb = t, T - 1 - t
        # block-diagonal fused matmul: (B, 2H) @ (2H, 8H) drives both directions.
        g_pre = (jnp.concatenate([pre[tf, :, :G4], pre[tb, :, G4:]], axis=1)
                 + jnp.dot(jnp.concatenate([h_f, h_b], axis=1), whh,
                           preferred_element_type=jnp.float32))   # (B, 8H)
        # full-width nonlinearity; tanh selected on the g-gate lanes.
        act = jnp.where(tanh_lanes, jnp.tanh(g_pre), jax.nn.sigmoid(g_pre))

        i_f, f_f = act[:, 0:H], act[:, H:2 * H]
        g_f, o_f = act[:, 2 * H:3 * H], act[:, 3 * H:G4]
        i_b, f_b = act[:, G4:G4 + H], act[:, G4 + H:G4 + 2 * H]
        g_b, o_b = act[:, G4 + 2 * H:G4 + 3 * H], act[:, G4 + 3 * H:G8]

        c_f_new = f_f * c_f + i_f * g_f
        c_b_new = f_b * c_b + i_b * g_b
        h_f_new = o_f * jnp.tanh(c_f_new)
        h_b_new = o_b * jnp.tanh(c_b_new)

        m_f = mask_all[tf]                                        # (B, 1) bool
        m_b = mask_all[tb]
        # packed-sequence semantics: freeze state and zero outputs past each length.
        h_f = jnp.where(m_f, h_f_new, h_f)
        c_f = jnp.where(m_f, c_f_new, c_f)
        h_b = jnp.where(m_b, h_b_new, h_b)
        c_b = jnp.where(m_b, c_b_new, c_b)
        out_f[tf] = jnp.where(m_f, h_f_new, 0.0)
        out_b[tb] = jnp.where(m_b, h_b_new, 0.0)

    # ---- classification head: one (T*B, 2H) @ (2H, Kp) matmul, lane-dense store ----
    feat = jnp.concatenate(
        [jnp.concatenate([out_f[t], out_b[t]], axis=1) for t in range(T)], axis=0)
    scores_ref[...] = (jnp.dot(feat, wcls_ref[...],
                               preferred_element_type=jnp.float32)
                       + bcls_ref[...])


def bilstm_scores(x, lengths, params):
    """x: (B, T, E) batch-first; lengths: (B,) int32.
    Returns (padded (T*Bp, Kp) scores, Bp)."""
    B, T, E = x.shape
    H = params["whh_blk"].shape[0] // 2
    Kp = params["wcls"].shape[1]
    lengths = jnp.asarray(lengths, jnp.int32)
    assert int(np.max(np.asarray(lengths))) <= T, "lengths must be <= T"

    # pad the batch to a sublane multiple (>= 8); padded rows masked via length 0
    Bp = max(8, -(-B // 8) * 8)
    x_p = jnp.zeros((Bp, T, E), x.dtype).at[:B].set(x)
    len_p = jnp.zeros((Bp, 1), jnp.int32).at[:B, 0].set(lengths)
    # time-major + flattened so the hoisted input projection is a single 2D matmul
    x2d = jnp.transpose(x_p, (1, 0, 2)).reshape(T * Bp, E)

    vmem = pl.BlockSpec(memory_space=pltpu.MemorySpace.VMEM)
    kernel = functools.partial(_bilstm_kernel, T=T, B=Bp, H=H)
    # TODO(synk): when scaling T*Bp/H, chunk T with a grid axis (carry h/c in VMEM
    # scratch, dimension_semantics with a parallel batch axis for v7x megacore) and set
    # pltpu.CompilerParams(vmem_limit_bytes=...) for v5e's 16 MiB scoped default; cast
    # weights to bf16 for the MXU. Unneeded at these toy sizes (<1 MiB resident).
    scores_pad = pl.pallas_call(
        kernel,
        out_shape=jax.ShapeDtypeStruct((T * Bp, Kp), jnp.float32),
        in_specs=[vmem] * 7,
        out_specs=vmem,
    )(x2d, len_p, params["wih"], params["whh_blk"], params["b"],
      params["wcls"], params["bcls"])
    return scores_pad, Bp


def bilstm_forward(x, lengths, params, tagset_size, threshold=0.4):
    """Mirrors BiLSTM.forward (CrossEntropy branch): returns (scores, tag_seq lists)."""
    B, T, _ = x.shape
    Kp = params["wcls"].shape[1]
    assert tagset_size <= Kp
    scores_pad, Bp = bilstm_scores(x, lengths, params)            # (T*Bp, Kp)
    scores = jnp.transpose(
        scores_pad.reshape(T, Bp, Kp)[:, :B, :tagset_size], (1, 0, 2))  # (B, T, K)
    probs = jax.nn.softmax(scores, axis=2)                        # nn.Softmax(dim=2)
    tag_seq = probs[:, :, 1] > threshold
    # TODO(synk): per-sample truncation to Python lists is host-side glue (matches the
    # list comprehension in forward); not a kernel op.
    lens_host = np.asarray(lengths)
    tags = [tag_seq[i].tolist()[: int(l)] for i, l in enumerate(lens_host)]
    return scores, tags


def _reference_scores(x, lengths, params, K):
    """Pure-JAX bidirectional-LSTM + Linear reference (packed-sequence semantics)."""
    B, T, _ = x.shape
    H = params["whh_blk"].shape[0] // 2
    G4 = 4 * H
    wih_f, wih_b = params["wih"][:, :G4], params["wih"][:, G4:]
    whh_f = params["whh_blk"][:H, :G4]
    whh_b = params["whh_blk"][H:, G4:]
    b_f, b_b = params["b"][:, :G4], params["b"][:, G4:]
    lens = jnp.asarray(lengths, jnp.int32).reshape(B, 1)

    def cell(x_t, h, c, wih, whh, b):
        g = x_t @ wih + h @ whh + b
        i = jax.nn.sigmoid(g[:, :H])
        f = jax.nn.sigmoid(g[:, H:2 * H])
        gg = jnp.tanh(g[:, 2 * H:3 * H])
        o = jax.nn.sigmoid(g[:, 3 * H:])
        c2 = f * c + i * gg
        return o * jnp.tanh(c2), c2

    h = c = jnp.zeros((B, H), jnp.float32)
    out_f = []
    for t in range(T):
        hn, cn = cell(x[:, t], h, c, wih_f, whh_f, b_f)
        m = t < lens
        h, c = jnp.where(m, hn, h), jnp.where(m, cn, c)
        out_f.append(jnp.where(m, hn, 0.0))
    h = c = jnp.zeros((B, H), jnp.float32)
    out_b = [None] * T
    for t in range(T - 1, -1, -1):
        hn, cn = cell(x[:, t], h, c, wih_b, whh_b, b_b)
        m = t < lens
        h, c = jnp.where(m, hn, h), jnp.where(m, cn, c)
        out_b[t] = jnp.where(m, hn, 0.0)
    feat = jnp.stack([jnp.concatenate([out_f[t], out_b[t]], axis=1)
                      for t in range(T)], axis=1)                 # (B, T, 2H)
    return feat @ params["wcls"][:, :K] + params["bcls"][:, :K]


def init_params(key, E, H, K, Kp=128):
    ks = jax.random.split(key, 10)
    k_lstm = 1.0 / float(H) ** 0.5
    k_cls = 1.0 / float(2 * H) ** 0.5

    def u(k, shape, bound):
        return jax.random.uniform(k, shape, jnp.float32, -bound, bound)

    # fused (·, 4H) weights; gate order i, f, g, o along the 4H axis as in PyTorch
    wih_f = u(ks[0], (E, 4 * H), k_lstm)
    wih_b = u(ks[1], (E, 4 * H), k_lstm)
    whh_f = u(ks[2], (H, 4 * H), k_lstm)
    whh_b = u(ks[3], (H, 4 * H), k_lstm)
    b_f = u(ks[4], (1, 4 * H), k_lstm) + u(ks[5], (1, 4 * H), k_lstm)   # b_ih + b_hh
    b_b = u(ks[6], (1, 4 * H), k_lstm) + u(ks[7], (1, 4 * H), k_lstm)
    wcls = u(ks[8], (2 * H, K), k_cls)          # Linear(2H -> K), fwd half then bwd half
    bcls = u(ks[9], (1, K), k_cls)

    # block-diagonal recurrent weight so both directions share one per-step matmul
    whh_blk = jnp.zeros((2 * H, 8 * H), jnp.float32)
    whh_blk = whh_blk.at[:H, :4 * H].set(whh_f)
    whh_blk = whh_blk.at[H:, 4 * H:].set(whh_b)

    pad = ((0, 0), (0, Kp - K))                 # lane-dense classifier output
    return dict(
        wih=jnp.concatenate([wih_f, wih_b], axis=1),     # (E, 8H): fwd gates | bwd gates
        whh_blk=whh_blk,                                  # (2H, 8H) block-diagonal
        b=jnp.concatenate([b_f, b_b], axis=1),            # (1, 8H)
        wcls=jnp.pad(wcls, pad),                          # (2H, Kp)
        bcls=jnp.pad(bcls, pad),                          # (1, Kp)
    )


if __name__ == "__main__":
    B, T, E, H, K = 2, 8, 16, 32, 4   # batch, seq, embedding_dim, hidden_dim, tagset_size
    key = jax.random.PRNGKey(0)
    kx, kp = jax.random.split(key)
    x = jax.random.normal(kx, (B, T, E), jnp.float32)
    lengths = jnp.array([8, 5], dtype=jnp.int32)
    params = init_params(kp, E, H, K)

    scores, tags = bilstm_forward(x, lengths, params, tagset_size=K, threshold=0.4)
    scores = jax.block_until_ready(scores)

    # correctness vs. pure-JAX packed-bidirectional-LSTM reference
    ref = _reference_scores(x, lengths, params, K)
    err = float(jnp.max(jnp.abs(scores - ref)))
    assert err < 1e-4, f"kernel/reference mismatch: max abs err = {err}"
    assert scores.shape == (B, T, K)
    assert len(tags) == B and len(tags[0]) == 8 and len(tags[1]) == 5
    print("KERNEL_OK")
</pallas_src>

<mosaic_0001>
module attributes {stable_mosaic.version = 11 : i64} {
  func.func @_bilstm_kernel(%arg0: memref<64x16xf32, #tpu.memory_space<vmem>>, %arg1: memref<8x1xi32, #tpu.memory_space<vmem>>, %arg2: memref<16x256xf32, #tpu.memory_space<vmem>>, %arg3: memref<64x256xf32, #tpu.memory_space<vmem>>, %arg4: memref<1x256xf32, #tpu.memory_space<vmem>>, %arg5: memref<64x128xf32, #tpu.memory_space<vmem>>, %arg6: memref<1x128xf32, #tpu.memory_space<vmem>>, %arg7: memref<64x128xf32, #tpu.memory_space<vmem>>) attributes {dimension_semantics = [], scalar_prefetch = 0 : i64, scratch_operands = 0 : i64, tpu.core_type = #tpu.core_type<tc>} {
    %c0 = arith.constant 0 : index
    %c0_0 = arith.constant 0 : index
    %0 = vector.load %arg1[%c0, %c0_0] : memref<8x1xi32, #tpu.memory_space<vmem>>, vector<8x1xi32>
    %c0_1 = arith.constant 0 : index
    %c0_2 = arith.constant 0 : index
    %1 = vector.load %arg0[%c0_1, %c0_2] : memref<64x16xf32, #tpu.memory_space<vmem>>, vector<64x16xf32>
    %c0_3 = arith.constant 0 : index
    %c0_4 = arith.constant 0 : index
    %2 = vector.load %arg2[%c0_3, %c0_4] : memref<16x256xf32, #tpu.memory_space<vmem>>, vector<16x256xf32>
    %cst = arith.constant dense<0.000000e+00> : vector<64x256xf32>
    %3 = tpu.matmul %1, %2, %cst {dimension_numbers = #tpu.dot_dimension_numbers<[1], [0], [0], [1], [0, 0, 1, 1], [], []>} : vector<64x16xf32>, vector<16x256xf32>, vector<64x256xf32> -> vector<64x256xf32>
    %c0_5 = arith.constant 0 : index
    %c0_6 = arith.constant 0 : index
    %4 = vector.load %arg4[%c0_5, %c0_6] : memref<1x256xf32, #tpu.memory_space<vmem>>, vector<1x256xf32>
    %5 = vector.broadcast %4 : vector<1x256xf32> to vector<64x256xf32>
    %6 = arith.addf %3, %5 : vector<64x256xf32>
    %7 = vector.shape_cast %6 : vector<64x256xf32> to vector<8x8x256xf32>
    %8 = tpu.iota {dimensions = array<i32: 0>} : vector<8x8x1xi32>
    %9 = vector.shape_cast %0 : vector<8x1xi32> to vector<1x8x1xi32>
    %10 = vector.broadcast %9 : vector<1x8x1xi32> to vector<8x8x1xi32>
    %11 = arith.cmpi slt, %8, %10 : vector<8x8x1xi32>
    %12 = tpu.iota {dimensions = array<i32: 1>} : vector<8x256xi32>
    %c64_i32 = arith.constant 64 : i32
    %13 = vector.broadcast %c64_i32 : i32 to vector<8x256xi32>
    %14 = arith.cmpi sge, %12, %13 : vector<8x256xi32>
    %c96_i32 = arith.constant 96 : i32
    %15 = vector.broadcast %c96_i32 : i32 to vector<8x256xi32>
    %16 = arith.cmpi slt, %12, %15 : vector<8x256xi32>
    %17 = arith.andi %14, %16 : vector<8x256xi1>
    %c192_i32 = arith.constant 192 : i32
    %18 = vector.broadcast %c192_i32 : i32 to vector<8x256xi32>
    %19 = arith.cmpi sge, %12, %18 : vector<8x256xi32>
    %c224_i32 = arith.constant 224 : i32
    %20 = vector.broadcast %c224_i32 : i32 to vector<8x256xi32>
    %21 = arith.cmpi slt, %12, %20 : vector<8x256xi32>
    %22 = arith.andi %19, %21 : vector<8x256xi1>
    %23 = arith.ori %17, %22 : vector<8x256xi1>
    %c0_7 = arith.constant 0 : index
    %c0_8 = arith.constant 0 : index
    %24 = vector.load %arg3[%c0_7, %c0_8] : memref<64x256xf32, #tpu.memory_space<vmem>>, vector<64x256xf32>
    %cst_9 = arith.constant 0.000000e+00 : f32
    %25 = vector.broadcast %cst_9 : f32 to vector<8x32xf32>
    %cst_10 = arith.constant 0.000000e+00 : f32
    %26 = vector.broadcast %cst_10 : f32 to vector<8x32xf32>
    %cst_11 = arith.constant 0.000000e+00 : f32
    %27 = vector.broadcast %cst_11 : f32 to vector<8x32xf32>
    %cst_12 = arith.constant 0.000000e+00 : f32
    %28 = vector.broadcast %cst_12 : f32 to vector<8x32xf32>
    %29 = vector.extract_strided_slice %7 {offsets = [0, 0, 0], sizes = [1, 8, 128], strides = [1, 1, 1]} : vector<8x8x256xf32> to vector<1x8x128xf32>
    %30 = vector.shape_cast %29 : vector<1x8x128xf32> to vector<8x128xf32>
    %31 = vector.extract_strided_slice %7 {offsets = [7, 0, 128], sizes = [1, 8, 128], strides = [1, 1, 1]} : vector<8x8x256xf32> to vector<1x8x128xf32>
    %32 = vector.shape_cast %31 : vector<1x8x128xf32> to vector<8x128xf32>
    %33 = tpu.concatenate %30, %32 in 1 : vector<8x128xf32>, vector<8x128xf32> -> vector<8x256xf32>
    %34 = tpu.concatenate %25, %27 in 1 : vector<8x32xf32>, vector<8x32xf32> -> vector<8x64xf32>
    %cst_13 = arith.constant dense<0.000000e+00> : vector<8x256xf32>
    %35 = tpu.matmul %34, %24, %cst_13 {dimension_numbers = #tpu.dot_dimension_numbers<[1], [0], [0], [1], [0, 0, 1, 1], [], []>} : vector<8x64xf32>, vector<64x256xf32>, vector<8x256xf32> -> vector<8x256xf32>
    %36 = arith.addf %33, %35 : vector<8x256xf32>
    %37 = math.tanh %36 : vector<8x256xf32>
    %38 = arith.negf %36 : vector<8x256xf32>
    %39 = math.exp %38 : vector<8x256xf32>
    %cst_14 = arith.constant 1.000000e+00 : f32
    %40 = vector.broadcast %cst_14 : f32 to vector<8x256xf32>
    %41 = arith.addf %40, %39 : vector<8x256xf32>
    %42 = arith.divf %40, %41 : vector<8x256xf32>
    %43 = arith.select %23, %37, %42 : vector<8x256xi1>, vector<8x256xf32>
    %44 = vector.extract_strided_slice %43 {offsets = [0, 0], sizes = [8, 32], strides = [1, 1]} : vector<8x256xf32> to vector<8x32xf32>
    %45 = vector.extract_strided_slice %43 {offsets = [0, 32], sizes = [8, 32], strides = [1, 1]} : vector<8x256xf32> to vector<8x32xf32>
    %46 = vector.extract_strided_slice %43 {offsets = [0, 64], sizes = [8, 32], strides = [1, 1]} : vector<8x256xf32> to vector<8x32xf32>
    %47 = vector.extract_strided_slice %43 {offsets = [0, 96], sizes = [8, 32], strides = [1, 1]} : vector<8x256xf32> to vector<8x32xf32>
    %48 = vector.extract_strided_slice %43 {offsets = [0, 128], sizes = [8, 32], strides = [1, 1]} : vector<8x256xf32> to vector<8x32xf32>
    %49 = vector.extract_strided_slice %43 {offsets = [0, 160], sizes = [8, 32], strides = [1, 1]} : vector<8x256xf32> to vector<8x32xf32>
    %50 = vector.extract_strided_slice %43 {offsets = [0, 192], sizes = [8, 32], strides = [1, 1]} : vector<8x256xf32> to vector<8x32xf32>
    %51 = vector.extract_strided_slice %43 {offsets = [0, 224], sizes = [8, 32], strides = [1, 1]} : vector<8x256xf32> to vector<8x32xf32>
    %52 = arith.mulf %45, %26 : vector<8x32xf32>
    %53 = arith.mulf %44, %46 : vector<8x32xf32>
    %54 = arith.addf %52, %53 : vector<8x32xf32>
    %55 = arith.mulf %49, %28 : vector<8x32xf32>
    %56 = arith.mulf %48, %50 : vector<8x32xf32>
    %57 = arith.addf %55, %56 : vector<8x32xf32>
    %58 = math.tanh %54 : vector<8x32xf32>
    %59 = arith.mulf %47, %58 : vector<8x32xf32>
    %60 = math.tanh %57 : vector<8x32xf32>
    %61 = arith.mulf %51, %60 : vector<8x32xf32>
    %62 = vector.extract_strided_slice %11 {offsets = [0, 0, 0], sizes = [1, 8, 1], strides = [1, 1, 1]} : vector<8x8x1xi1> to vector<1x8x1xi1>
    %63 = vector.shape_cast %62 : vector<1x8x1xi1> to vector<8x1xi1>
    %64 = vector.extract_strided_slice %11 {offsets = [7, 0, 0], sizes = [1, 8, 1], strides = [1, 1, 1]} : vector<8x8x1xi1> to vector<1x8x1xi1>
    %65 = vector.shape_cast %64 : vector<1x8x1xi1> to vector<8x1xi1>
    %66 = vector.shape_cast %63 : vector<8x1xi1> to vector<8x1xi1>
    %67 = vector.broadcast %66 : vector<8x1xi1> to vector<8x32xi1>
    %68 = arith.select %67, %59, %25 : vector<8x32xi1>, vector<8x32xf32>
    %69 = vector.shape_cast %63 : vector<8x1xi1> to vector<8x1xi1>
    %70 = vector.broadcast %69 : vector<8x1xi1> to vector<8x32xi1>
    %71 = arith.select %70, %54, %26 : vector<8x32xi1>, vector<8x32xf32>
    %72 = vector.shape_cast %65 : vector<8x1xi1> to vector<8x1xi1>
    %73 = vector.broadcast %72 : vector<8x1xi1> to vector<8x32xi1>
    %74 = arith.select %73, %61, %27 : vector<8x32xi1>, vector<8x32xf32>
    %75 = vector.shape_cast %65 : vector<8x1xi1> to vector<8x1xi1>
    %76 = vector.broadcast %75 : vector<8x1xi1> to vector<8x32xi1>
    %77 = arith.select %76, %57, %28 : vector<8x32xi1>, vector<8x32xf32>
    %cst_15 = arith.constant 0.000000e+00 : f32
    %78 = vector.shape_cast %63 : vector<8x1xi1> to vector<8x1xi1>
    %79 = vector.broadcast %78 : vector<8x1xi1> to vector<8x32xi1>
    %80 = vector.broadcast %cst_15 : f32 to vector<8x32xf32>
    %81 = arith.select %79, %59, %80 : vector<8x32xi1>, vector<8x32xf32>
    %cst_16 = arith.constant 0.000000e+00 : f32
    %82 = vector.shape_cast %65 : vector<8x1xi1> to vector<8x1xi1>
    %83 = vector.broadcast %82 : vector<8x1xi1> to vector<8x32xi1>
    %84 = vector.broadcast %cst_16 : f32 to vector<8x32xf32>
    %85 = arith.select %83, %61, %84 : vector<8x32xi1>, vector<8x32xf32>
    %86 = vector.extract_strided_slice %7 {offsets = [1, 0, 0], sizes = [1, 8, 128], strides = [1, 1, 1]} : vector<8x8x256xf32> to vector<1x8x128xf32>
    %87 = vector.shape_cast %86 : vector<1x8x128xf32> to vector<8x128xf32>
    %88 = vector.extract_strided_slice %7 {offsets = [6, 0, 128], sizes = [1, 8, 128], strides = [1, 1, 1]} : vector<8x8x256xf32> to vector<1x8x128xf32>
    %89 = vector.shape_cast %88 : vector<1x8x128xf32> to vector<8x128xf32>
    %90 = tpu.concatenate %87, %89 in 1 : vector<8x128xf32>, vector<8x128xf32> -> vector<8x256xf32>
    %91 = tpu.concatenate %68, %74 in 1 : vector<8x32xf32>, vector<8x32xf32> -> vector<8x64xf32>
    %cst_17 = arith.constant dense<0.000000e+00> : vector<8x256xf32>
    %92 = tpu.matmul %91, %24, %cst_17 {dimension_numbers = #tpu.dot_dimension_numbers<[1], [0], [0], [1], [0, 0, 1, 1], [], []>} : vector<8x64xf32>, vector<64x256xf32>, vector<8x256xf32> -> vector<8x256xf32>
    %93 = arith.addf %90, %92 : vector<8x256xf32>
    %94 = math.tanh %93 : vector<8x256xf32>
    %95 = arith.negf %93 : vector<8x256xf32>
    %96 = math.exp %95 : vector<8x256xf32>
    %cst_18 = arith.constant 1.000000e+00 : f32
    %97 = vector.broadcast %cst_18 : f32 to vector<8x256xf32>
    %98 = arith.addf %97, %96 : vector<8x256xf32>
    %99 = arith.divf %97, %98 : vector<8x256xf32>
    %100 = arith.select %23, %94, %99 : vector<8x256xi1>, vector<8x256xf32>
    %101 = vector.extract_strided_slice %100 {offsets = [0, 0], sizes = [8, 32], strides = [1, 1]} : vector<8x256xf32> to vector<8x32xf32>
    %102 = vector.extract_strided_slice %100 {offsets = [0, 32], sizes = [8, 32], strides = [1, 1]} : vector<8x256xf32> to vector<8x32xf32>
    %103 = vector.extract_strided_slice %100 {offsets = [0, 64], sizes = [8, 32], strides = [1, 1]} : vector<8x256xf32> to vector<8x32xf32>
    %104 = vector.extract_strided_slice %100 {offsets = [0, 96], sizes = [8, 32], strides = [1, 1]} : vector<8x256xf32> to vector<8x32xf32>
    %105 = vector.extract_strided_slice %100 {offsets = [0, 128], sizes = [8, 32], strides = [1, 1]} : vector<8x256xf32> to vector<8x32xf32>
    %106 = vector.extract_strided_slice %100 {offsets = [0, 160], sizes = [8, 32], strides = [1, 1]} : vector<8x256xf32> to vector<8x32xf32>
    %107 = vector.extract_strided_slice %100 {offsets = [0, 192], sizes = [8, 32], strides = [1, 1]} : vector<8x256xf32> to vector<8x32xf32>
    %108 = vector.extract_strided_slice %100 {offsets = [0, 224], sizes = [8, 32], strides = [1, 1]} : vector<8x256xf32> to vector<8x32xf32>
    %109 = arith.mulf %102, %71 : vector<8x32xf32>
    %110 = arith.mulf %101, %103 : vector<8x32xf32>
    %111 = arith.addf %109, %110 : vector<8x32xf32>
    %112 = arith.mulf %106, %77 : vector<8x32xf32>
    %113 = arith.mulf %105, %107 : vector<8x32xf32>
    %114 = arith.addf %112, %113 : vector<8x32xf32>
    %115 = math.tanh %111 : vector<8x32xf32>
    %116 = arith.mulf %104, %115 : vector<8x32xf32>
    %117 = math.tanh %114 : vector<8x32xf32>
    %118 = arith.mulf %108, %117 : vector<8x32xf32>
    %119 = vector.extract_strided_slice %11 {offsets = [1, 0, 0], sizes = [1, 8, 1], strides = [1, 1, 1]} : vector<8x8x1xi1> to vector<1x8x1xi1>
    %120 = vector.shape_cast %119 : vector<1x8x1xi1> to vector<8x1xi1>
    %121 = vector.extract_strided_slice %11 {offsets = [6, 0, 0], sizes = [1, 8, 1], strides = [1, 1, 1]} : vector<8x8x1xi1> to vector<1x8x1xi1>
    %122 = vector.shape_cast %121 : vector<1x8x1xi1> to vector<8x1xi1>
    %123 = vector.shape_cast %120 : vector<8x1xi1> to vector<8x1xi1>
    %124 = vector.broadcast %123 : vector<8x1xi1> to vector<8x32xi1>
    %125 = arith.select %124, %116, %68 : vector<8x32xi1>, vector<8x32xf32>
    %126 = vector.shape_cast %120 : vector<8x1xi1> to vector<8x1xi1>
    %127 = vector.broadcast %126 : vector<8x1xi1> to vector<8x32xi1>
    %128 = arith.select %127, %111, %71 : vector<8x32xi1>, vector<8x32xf32>
    %129 = vector.shape_cast %122 : vector<8x1xi1> to vector<8x1xi1>
    %130 = vector.broadcast %129 : vector<8x1xi1> to vector<8x32xi1>
    %131 = arith.select %130, %118, %74 : vector<8x32xi1>, vector<8x32xf32>
    %132 = vector.shape_cast %122 : vector<8x1xi1> to vector<8x1xi1>
    %133 = vector.broadcast %132 : vector<8x1xi1> to vector<8x32xi1>
    %134 = arith.select %133, %114, %77 : vector<8x32xi1>, vector<8x32xf32>
    %cst_19 = arith.constant 0.000000e+00 : f32
    %135 = vector.shape_cast %120 : vector<8x1xi1> to vector<8x1xi1>
    %136 = vector.broadcast %135 : vector<8x1xi1> to vector<8x32xi1>
    %137 = vector.broadcast %cst_19 : f32 to vector<8x32xf32>
    %138 = arith.select %136, %116, %137 : vector<8x32xi1>, vector<8x32xf32>
    %cst_20 = arith.constant 0.000000e+00 : f32
    %139 = vector.shape_cast %122 : vector<8x1xi1> to vector<8x1xi1>
    %140 = vector.broadcast %139 : vector<8x1xi1> to vector<8x32xi1>
    %141 = vector.broadcast %cst_20 : f32 to vector<8x32xf32>
    %142 = arith.select %140, %118, %141 : vector<8x32xi1>, vector<8x32xf32>
    %143 = vector.extract_strided_slice %7 {offsets = [2, 0, 0], sizes = [1, 8, 128], strides = [1, 1, 1]} : vector<8x8x256xf32> to vector<1x8x128xf32>
    %144 = vector.shape_cast %143 : vector<1x8x128xf32> to vector<8x128xf32>
    %145 = vector.extract_strided_slice %7 {offsets = [5, 0, 128], sizes = [1, 8, 128], strides = [1, 1, 1]} : vector<8x8x256xf32> to vector<1x8x128xf32>
    %146 = vector.shape_cast %145 : vector<1x8x128xf32> to vector<8x128xf32>
    %147 = tpu.concatenate %144, %146 in 1 : vector<8x128xf32>, vector<8x128xf32> -> vector<8x256xf32>
    %148 = tpu.concatenate %125, %131 in 1 : vector<8x32xf32>, vector<8x32xf32> -> vector<8x64xf32>
    %cst_21 = arith.constant dense<0.000000e+00> : vector<8x256xf32>
    %149 = tpu.matmul %148, %24, %cst_21 {dimension_numbers = #tpu.dot_dimension_numbers<[1], [0], [0], [1], [0, 0, 1, 1], [], []>} : vector<8x64xf32>, vector<64x256xf32>, vector<8x256xf32> -> vector<8x256xf32>
    %150 = arith.addf %147, %149 : vector<8x256xf32>
    %151 = math.tanh %150 : vector<8x256xf32>
    %152 = arith.negf %150 : vector<8x256xf32>
    %153 = math.exp %152 : vector<8x256xf32>
    %cst_22 = arith.constant 1.000000e+00 : f32
    %154 = vector.broadcast %cst_22 : f32 to vector<8x256xf32>
    %155 = arith.addf %154, %153 : vector<8x256xf32>
    %156 = arith.divf %154, %155 : vector<8x256xf32>
    %157 = arith.select %23, %151, %156 : vector<8x256xi1>, vector<8x256xf32>
    %158 = vector.extract_strided_slice %157 {offsets = [0, 0], sizes = [8, 32], strides = [1, 1]} : vector<8x256xf32> to vector<8x32xf32>
    %159 = vector.extract_strided_slice %157 {offsets = [0, 32], sizes = [8, 32], strides = [1, 1]} : vector<8x256xf32> to vector<8x32xf32>
    %160 = vector.extract_strided_slice %157 {offsets = [0, 64], sizes = [8, 32], strides = [1, 1]} : vector<8x256xf32> to vector<8x32xf32>
    %161 = vector.extract_strided_slice %157 {offsets = [0, 96], sizes = [8, 32], strides = [1, 1]} : vector<8x256xf32> to vector<8x32xf32>
    %162 = vector.extract_strided_slice %157 {offsets = [0, 128], sizes = [8, 32], strides = [1, 1]} : vector<8x256xf32> to vector<8x32xf32>
    %163 = vector.extract_strided_slice %157 {offsets = [0, 160], sizes = [8, 32], strides = [1, 1]} : vector<8x256xf32> to vector<8x32xf32>
    %164 = vector.extract_strided_slice %157 {offsets = [0, 192], sizes = [8, 32], strides = [1, 1]} : vector<8x256xf32> to vector<8x32xf32>
    %165 = vector.extract_strided_slice %157 {offsets = [0, 224], sizes = [8, 32], strides = [1, 1]} : vector<8x256xf32> to vector<8x32xf32>
    %166 = arith.mulf %159, %128 : vector<8x32xf32>
    %167 = arith.mulf %158, %160 : vector<8x32xf32>
    %168 = arith.addf %166, %167 : vector<8x32xf32>
    %169 = arith.mulf %163, %134 : vector<8x32xf32>
    %170 = arith.mulf %162, %164 : vector<8x32xf32>
    %171 = arith.addf %169, %170 : vector<8x32xf32>
    %172 = math.tanh %168 : vector<8x32xf32>
    %173 = arith.mulf %161, %172 : vector<8x32xf32>
    %174 = math.tanh %171 : vector<8x32xf32>
    %175 = arith.mulf %165, %174 : vector<8x32xf32>
    %176 = vector.extract_strided_slice %11 {offsets = [2, 0, 0], sizes = [1, 8, 1], strides = [1, 1, 1]} : vector<8x8x1xi1> to vector<1x8x1xi1>
    %177 = vector.shape_cast %176 : vector<1x8x1xi1> to vector<8x1xi1>
    %178 = vector.extract_strided_slice %11 {offsets = [5, 0, 0], sizes = [1, 8, 1], strides = [1, 1, 1]} : vector<8x8x1xi1> to vector<1x8x1xi1>
    %179 = vector.shape_cast %178 : vector<1x8x1xi1> to vector<8x1xi1>
    %180 = vector.shape_cast %177 : vector<8x1xi1> to vector<8x1xi1>
    %181 = vector.broadcast %180 : vector<8x1xi1> to vector<8x32xi1>
    %182 = arith.select %181, %173, %125 : vector<8x32xi1>, vector<8x32xf32>
    %183 = vector.shape_cast %177 : vector<8x1xi1> to vector<8x1xi1>
    %184 = vector.broadcast %183 : vector<8x1xi1> to vector<8x32xi1>
    %185 = arith.select %184, %168, %128 : vector<8x32xi1>, vector<8x32xf32>
    %186 = vector.shape_cast %179 : vector<8x1xi1> to vector<8x1xi1>
    %187 = vector.broadcast %186 : vector<8x1xi1> to vector<8x32xi1>
    %188 = arith.select %187, %175, %131 : vector<8x32xi1>, vector<8x32xf32>
    %189 = vector.shape_cast %179 : vector<8x1xi1> to vector<8x1xi1>
    %190 = vector.broadcast %189 : vector<8x1xi1> to vector<8x32xi1>
    %191 = arith.select %190, %171, %134 : vector<8x32xi1>, vector<8x32xf32>
    %cst_23 = arith.constant 0.000000e+00 : f32
    %192 = vector.shape_cast %177 : vector<8x1xi1> to vector<8x1xi1>
    %193 = vector.broadcast %192 : vector<8x1xi1> to vector<8x32xi1>
    %194 = vector.broadcast %cst_23 : f32 to vector<8x32xf32>
    %195 = arith.select %193, %173, %194 : vector<8x32xi1>, vector<8x32xf32>
    %cst_24 = arith.constant 0.000000e+00 : f32
    %196 = vector.shape_cast %179 : vector<8x1xi1> to vector<8x1xi1>
    %197 = vector.broadcast %196 : vector<8x1xi1> to vector<8x32xi1>
    %198 = vector.broadcast %cst_24 : f32 to vector<8x32xf32>
    %199 = arith.select %197, %175, %198 : vector<8x32xi1>, vector<8x32xf32>
    %200 = vector.extract_strided_slice %7 {offsets = [3, 0, 0], sizes = [1, 8, 128], strides = [1, 1, 1]} : vector<8x8x256xf32> to vector<1x8x128xf32>
    %201 = vector.shape_cast %200 : vector<1x8x128xf32> to vector<8x128xf32>
    %202 = vector.extract_strided_slice %7 {offsets = [4, 0, 128], sizes = [1, 8, 128], strides = [1, 1, 1]} : vector<8x8x256xf32> to vector<1x8x128xf32>
    %203 = vector.shape_cast %202 : vector<1x8x128xf32> to vector<8x128xf32>
    %204 = tpu.concatenate %201, %203 in 1 : vector<8x128xf32>, vector<8x128xf32> -> vector<8x256xf32>
    %205 = tpu.concatenate %182, %188 in 1 : vector<8x32xf32>, vector<8x32xf32> -> vector<8x64xf32>
    %cst_25 = arith.constant dense<0.000000e+00> : vector<8x256xf32>
    %206 = tpu.matmul %205, %24, %cst_25 {dimension_numbers = #tpu.dot_dimension_numbers<[1], [0], [0], [1], [0, 0, 1, 1], [], []>} : vector<8x64xf32>, vector<64x256xf32>, vector<8x256xf32> -> vector<8x256xf32>
    %207 = arith.addf %204, %206 : vector<8x256xf32>
    %208 = math.tanh %207 : vector<8x256xf32>
    %209 = arith.negf %207 : vector<8x256xf32>
    %210 = math.exp %209 : vector<8x256xf32>
    %cst_26 = arith.constant 1.000000e+00 : f32
    %211 = vector.broadcast %cst_26 : f32 to vector<8x256xf32>
    %212 = arith.addf %211, %210 : vector<8x256xf32>
    %213 = arith.divf %211, %212 : vector<8x256xf32>
    %214 = arith.select %23, %208, %213 : vector<8x256xi1>, vector<8x256xf32>
    %215 = vector.extract_strided_slice %214 {offsets = [0, 0], sizes = [8, 32], strides = [1, 1]} : vector<8x256xf32> to vector<8x32xf32>
    %216 = vector.extract_strided_slice %214 {offsets = [0, 32], sizes = [8, 32], strides = [1, 1]} : vector<8x256xf32> to vector<8x32xf32>
    %217 = vector.extract_strided_slice %214 {offsets = [0, 64], sizes = [8, 32], strides = [1, 1]} : vector<8x256xf32> to vector<8x32xf32>
    %218 = vector.extract_strided_slice %214 {offsets = [0, 96], sizes = [8, 32], strides = [1, 1]} : vector<8x256xf32> to vector<8x32xf32>
    %219 = vector.extract_strided_slice %214 {offsets = [0, 128], sizes = [8, 32], strides = [1, 1]} : vector<8x256xf32> to vector<8x32xf32>
    %220 = vector.extract_strided_slice %214 {offsets = [0, 160], sizes = [8, 32], strides = [1, 1]} : vector<8x256xf32> to vector<8x32xf32>
    %221 = vector.extract_strided_slice %214 {offsets = [0, 192], sizes = [8, 32], strides = [1, 1]} : vector<8x256xf32> to vector<8x32xf32>
    %222 = vector.extract_strided_slice %214 {offsets = [0, 224], sizes = [8, 32], strides = [1, 1]} : vector<8x256xf32> to vector<8x32xf32>
    %223 = arith.mulf %216, %185 : vector<8x32xf32>
    %224 = arith.mulf %215, %217 : vector<8x32xf32>
    %225 = arith.addf %223, %224 : vector<8x32xf32>
    %226 = arith.mulf %220, %191 : vector<8x32xf32>
    %227 = arith.mulf %219, %221 : vector<8x32xf32>
    %228 = arith.addf %226, %227 : vector<8x32xf32>
    %229 = math.tanh %225 : vector<8x32xf32>
    %230 = arith.mulf %218, %229 : vector<8x32xf32>
    %231 = math.tanh %228 : vector<8x32xf32>
    %232 = arith.mulf %222, %231 : vector<8x32xf32>
    %233 = vector.extract_strided_slice %11 {offsets = [3, 0, 0], sizes = [1, 8, 1], strides = [1, 1, 1]} : vector<8x8x1xi1> to vector<1x8x1xi1>
    %234 = vector.shape_cast %233 : vector<1x8x1xi1> to vector<8x1xi1>
    %235 = vector.extract_strided_slice %11 {offsets = [4, 0, 0], sizes = [1, 8, 1], strides = [1, 1, 1]} : vector<8x8x1xi1> to vector<1x8x1xi1>
    %236 = vector.shape_cast %235 : vector<1x8x1xi1> to vector<8x1xi1>
    %237 = vector.shape_cast %234 : vector<8x1xi1> to vector<8x1xi1>
    %238 = vector.broadcast %237 : vector<8x1xi1> to vector<8x32xi1>
    %239 = arith.select %238, %230, %182 : vector<8x32xi1>, vector<8x32xf32>
    %240 = vector.shape_cast %234 : vector<8x1xi1> to vector<8x1xi1>
    %241 = vector.broadcast %240 : vector<8x1xi1> to vector<8x32xi1>
    %242 = arith.select %241, %225, %185 : vector<8x32xi1>, vector<8x32xf32>
    %243 = vector.shape_cast %236 : vector<8x1xi1> to vector<8x1xi1>
    %244 = vector.broadcast %243 : vector<8x1xi1> to vector<8x32xi1>
    %245 = arith.select %244, %232, %188 : vector<8x32xi1>, vector<8x32xf32>
    %246 = vector.shape_cast %236 : vector<8x1xi1> to vector<8x1xi1>
    %247 = vector.broadcast %246 : vector<8x1xi1> to vector<8x32xi1>
    %248 = arith.select %247, %228, %191 : vector<8x32xi1>, vector<8x32xf32>
    %cst_27 = arith.constant 0.000000e+00 : f32
    %249 = vector.shape_cast %234 : vector<8x1xi1> to vector<8x1xi1>
    %250 = vector.broadcast %249 : vector<8x1xi1> to vector<8x32xi1>
    %251 = vector.broadcast %cst_27 : f32 to vector<8x32xf32>
    %252 = arith.select %250, %230, %251 : vector<8x32xi1>, vector<8x32xf32>
    %cst_28 = arith.constant 0.000000e+00 : f32
    %253 = vector.shape_cast %236 : vector<8x1xi1> to vector<8x1xi1>
    %254 = vector.broadcast %253 : vector<8x1xi1> to vector<8x32xi1>
    %255 = vector.broadcast %cst_28 : f32 to vector<8x32xf32>
    %256 = arith.select %254, %232, %255 : vector<8x32xi1>, vector<8x32xf32>
    %257 = vector.extract_strided_slice %7 {offsets = [4, 0, 0], sizes = [1, 8, 128], strides = [1, 1, 1]} : vector<8x8x256xf32> to vector<1x8x128xf32>
    %258 = vector.shape_cast %257 : vector<1x8x128xf32> to vector<8x128xf32>
    %259 = vector.extract_strided_slice %7 {offsets = [3, 0, 128], sizes = [1, 8, 128], strides = [1, 1, 1]} : vector<8x8x256xf32> to vector<1x8x128xf32>
    %260 = vector.shape_cast %259 : vector<1x8x128xf32> to vector<8x128xf32>
    %261 = tpu.concatenate %258, %260 in 1 : vector<8x128xf32>, vector<8x128xf32> -> vector<8x256xf32>
    %262 = tpu.concatenate %239, %245 in 1 : vector<8x32xf32>, vector<8x32xf32> -> vector<8x64xf32>
    %cst_29 = arith.constant dense<0.000000e+00> : vector<8x256xf32>
    %263 = tpu.matmul %262, %24, %cst_29 {dimension_numbers = #tpu.dot_dimension_numbers<[1], [0], [0], [1], [0, 0, 1, 1], [], []>} : vector<8x64xf32>, vector<64x256xf32>, vector<8x256xf32> -> vector<8x256xf32>
    %264 = arith.addf %261, %263 : vector<8x256xf32>
    %265 = math.tanh %264 : vector<8x256xf32>
    %266 = arith.negf %264 : vector<8x256xf32>
    %267 = math.exp %266 : vector<8x256xf32>
    %cst_30 = arith.constant 1.000000e+00 : f32
    %268 = vector.broadcast %cst_30 : f32 to vector<8x256xf32>
    %269 = arith.addf %268, %267 : vector<8x256xf32>
    %270 = arith.divf %268, %269 : vector<8x256xf32>
    %271 = arith.select %23, %265, %270 : vector<8x256xi1>, vector<8x256xf32>
    %272 = vector.extract_strided_slice %271 {offsets = [0, 0], sizes = [8, 32], strides = [1, 1]} : vector<8x256xf32> to vector<8x32xf32>
    %273 = vector.extract_strided_slice %271 {offsets = [0, 32], sizes = [8, 32], strides = [1, 1]} : vector<8x256xf32> to vector<8x32xf32>
    %274 = vector.extract_strided_slice %271 {offsets = [0, 64], sizes = [8, 32], strides = [1, 1]} : vector<8x256xf32> to vector<8x32xf32>
    %275 = vector.extract_strided_slice %271 {offsets = [0, 96], sizes = [8, 32], strides = [1, 1]} : vector<8x256xf32> to vector<8x32xf32>
    %276 = vector.extract_strided_slice %271 {offsets = [0, 128], sizes = [8, 32], strides = [1, 1]} : vector<8x256xf32> to vector<8x32xf32>
    %277 = vector.extract_strided_slice %271 {offsets = [0, 160], sizes = [8, 32], strides = [1, 1]} : vector<8x256xf32> to vector<8x32xf32>
    %278 = vector.extract_strided_slice %271 {offsets = [0, 192], sizes = [8, 32], strides = [1, 1]} : vector<8x256xf32> to vector<8x32xf32>
    %279 = vector.extract_strided_slice %271 {offsets = [0, 224], sizes = [8, 32], strides = [1, 1]} : vector<8x256xf32> to vector<8x32xf32>
    %280 = arith.mulf %273, %242 : vector<8x32xf32>
    %281 = arith.mulf %272, %274 : vector<8x32xf32>
    %282 = arith.addf %280, %281 : vector<8x32xf32>
    %283 = arith.mulf %277, %248 : vector<8x32xf32>
    %284 = arith.mulf %276, %278 : vector<8x32xf32>
    %285 = arith.addf %283, %284 : vector<8x32xf32>
    %286 = math.tanh %282 : vector<8x32xf32>
    %287 = arith.mulf %275, %286 : vector<8x32xf32>
    %288 = math.tanh %285 : vector<8x32xf32>
    %289 = arith.mulf %279, %288 : vector<8x32xf32>
    %290 = vector.extract_strided_slice %11 {offsets = [4, 0, 0], sizes = [1, 8, 1], strides = [1, 1, 1]} : vector<8x8x1xi1> to vector<1x8x1xi1>
    %291 = vector.shape_cast %290 : vector<1x8x1xi1> to vector<8x1xi1>
    %292 = vector.extract_strided_slice %11 {offsets = [3, 0, 0], sizes = [1, 8, 1], strides = [1, 1, 1]} : vector<8x8x1xi1> to vector<1x8x1xi1>
    %293 = vector.shape_cast %292 : vector<1x8x1xi1> to vector<8x1xi1>
    %294 = vector.shape_cast %291 : vector<8x1xi1> to vector<8x1xi1>
    %295 = vector.broadcast %294 : vector<8x1xi1> to vector<8x32xi1>
    %296 = arith.select %295, %287, %239 : vector<8x32xi1>, vector<8x32xf32>
    %297 = vector.shape_cast %291 : vector<8x1xi1> to vector<8x1xi1>
    %298 = vector.broadcast %297 : vector<8x1xi1> to vector<8x32xi1>
    %299 = arith.select %298, %282, %242 : vector<8x32xi1>, vector<8x32xf32>
    %300 = vector.shape_cast %293 : vector<8x1xi1> to vector<8x1xi1>
    %301 = vector.broadcast %300 : vector<8x1xi1> to vector<8x32xi1>
    %302 = arith.select %301, %289, %245 : vector<8x32xi1>, vector<8x32xf32>
    %303 = vector.shape_cast %293 : vector<8x1xi1> to vector<8x1xi1>
    %304 = vector.broadcast %303 : vector<8x1xi1> to vector<8x32xi1>
    %305 = arith.select %304, %285, %248 : vector<8x32xi1>, vector<8x32xf32>
    %cst_31 = arith.constant 0.000000e+00 : f32
    %306 = vector.shape_cast %291 : vector<8x1xi1> to vector<8x1xi1>
    %307 = vector.broadcast %306 : vector<8x1xi1> to vector<8x32xi1>
    %308 = vector.broadcast %cst_31 : f32 to vector<8x32xf32>
    %309 = arith.select %307, %287, %308 : vector<8x32xi1>, vector<8x32xf32>
    %cst_32 = arith.constant 0.000000e+00 : f32
    %310 = vector.shape_cast %293 : vector<8x1xi1> to vector<8x1xi1>
    %311 = vector.broadcast %310 : vector<8x1xi1> to vector<8x32xi1>
    %312 = vector.broadcast %cst_32 : f32 to vector<8x32xf32>
    %313 = arith.select %311, %289, %312 : vector<8x32xi1>, vector<8x32xf32>
    %314 = vector.extract_strided_slice %7 {offsets = [5, 0, 0], sizes = [1, 8, 128], strides = [1, 1, 1]} : vector<8x8x256xf32> to vector<1x8x128xf32>
    %315 = vector.shape_cast %314 : vector<1x8x128xf32> to vector<8x128xf32>
    %316 = vector.extract_strided_slice %7 {offsets = [2, 0, 128], sizes = [1, 8, 128], strides = [1, 1, 1]} : vector<8x8x256xf32> to vector<1x8x128xf32>
    %317 = vector.shape_cast %316 : vector<1x8x128xf32> to vector<8x128xf32>
    %318 = tpu.concatenate %315, %317 in 1 : vector<8x128xf32>, vector<8x128xf32> -> vector<8x256xf32>
    %319 = tpu.concatenate %296, %302 in 1 : vector<8x32xf32>, vector<8x32xf32> -> vector<8x64xf32>
    %cst_33 = arith.constant dense<0.000000e+00> : vector<8x256xf32>
    %320 = tpu.matmul %319, %24, %cst_33 {dimension_numbers = #tpu.dot_dimension_numbers<[1], [0], [0], [1], [0, 0, 1, 1], [], []>} : vector<8x64xf32>, vector<64x256xf32>, vector<8x256xf32> -> vector<8x256xf32>
    %321 = arith.addf %318, %320 : vector<8x256xf32>
    %322 = math.tanh %321 : vector<8x256xf32>
    %323 = arith.negf %321 : vector<8x256xf32>
    %324 = math.exp %323 : vector<8x256xf32>
    %cst_34 = arith.constant 1.000000e+00 : f32
    %325 = vector.broadcast %cst_34 : f32 to vector<8x256xf32>
    %326 = arith.addf %325, %324 : vector<8x256xf32>
    %327 = arith.divf %325, %326 : vector<8x256xf32>
    %328 = arith.select %23, %322, %327 : vector<8x256xi1>, vector<8x256xf32>
    %329 = vector.extract_strided_slice %328 {offsets = [0, 0], sizes = [8, 32], strides = [1, 1]} : vector<8x256xf32> to vector<8x32xf32>
    %330 = vector.extract_strided_slice %328 {offsets = [0, 32], sizes = [8, 32], strides = [1, 1]} : vector<8x256xf32> to vector<8x32xf32>
    %331 = vector.extract_strided_slice %328 {offsets = [0, 64], sizes = [8, 32], strides = [1, 1]} : vector<8x256xf32> to vector<8x32xf32>
    %332 = vector.extract_strided_slice %328 {offsets = [0, 96], sizes = [8, 32], strides = [1, 1]} : vector<8x256xf32> to vector<8x32xf32>
    %333 = vector.extract_strided_slice %328 {offsets = [0, 128], sizes = [8, 32], strides = [1, 1]} : vector<8x256xf32> to vector<8x32xf32>
    %334 = vector.extract_strided_slice %328 {offsets = [0, 160], sizes = [8, 32], strides = [1, 1]} : vector<8x256xf32> to vector<8x32xf32>
    %335 = vector.extract_strided_slice %328 {offsets = [0, 192], sizes = [8, 32], strides = [1, 1]} : vector<8x256xf32> to vector<8x32xf32>
    %336 = vector.extract_strided_slice %328 {offsets = [0, 224], sizes = [8, 32], strides = [1, 1]} : vector<8x256xf32> to vector<8x32xf32>
    %337 = arith.mulf %330, %299 : vector<8x32xf32>
    %338 = arith.mulf %329, %331 : vector<8x32xf32>
    %339 = arith.addf %337, %338 : vector<8x32xf32>
    %340 = arith.mulf %334, %305 : vector<8x32xf32>
    %341 = arith.mulf %333, %335 : vector<8x32xf32>
    %342 = arith.addf %340, %341 : vector<8x32xf32>
    %343 = math.tanh %339 : vector<8x32xf32>
    %344 = arith.mulf %332, %343 : vector<8x32xf32>
    %345 = math.tanh %342 : vector<8x32xf32>
    %346 = arith.mulf %336, %345 : vector<8x32xf32>
    %347 = vector.extract_strided_slice %11 {offsets = [5, 0, 0], sizes = [1, 8, 1], strides = [1, 1, 1]} : vector<8x8x1xi1> to vector<1x8x1xi1>
    %348 = vector.shape_cast %347 : vector<1x8x1xi1> to vector<8x1xi1>
    %349 = vector.extract_strided_slice %11 {offsets = [2, 0, 0], sizes = [1, 8, 1], strides = [1, 1, 1]} : vector<8x8x1xi1> to vector<1x8x1xi1>
    %350 = vector.shape_cast %349 : vector<1x8x1xi1> to vector<8x1xi1>
    %351 = vector.shape_cast %348 : vector<8x1xi1> to vector<8x1xi1>
    %352 = vector.broadcast %351 : vector<8x1xi1> to vector<8x32xi1>
    %353 = arith.select %352, %344, %296 : vector<8x32xi1>, vector<8x32xf32>
    %354 = vector.shape_cast %348 : vector<8x1xi1> to vector<8x1xi1>
    %355 = vector.broadcast %354 : vector<8x1xi1> to vector<8x32xi1>
    %356 = arith.select %355, %339, %299 : vector<8x32xi1>, vector<8x32xf32>
    %357 = vector.shape_cast %350 : vector<8x1xi1> to vector<8x1xi1>
    %358 = vector.broadcast %357 : vector<8x1xi1> to vector<8x32xi1>
    %359 = arith.select %358, %346, %302 : vector<8x32xi1>, vector<8x32xf32>
    %360 = vector.shape_cast %350 : vector<8x1xi1> to vector<8x1xi1>
    %361 = vector.broadcast %360 : vector<8x1xi1> to vector<8x32xi1>
    %362 = arith.select %361, %342, %305 : vector<8x32xi1>, vector<8x32xf32>
    %cst_35 = arith.constant 0.000000e+00 : f32
    %363 = vector.shape_cast %348 : vector<8x1xi1> to vector<8x1xi1>
    %364 = vector.broadcast %363 : vector<8x1xi1> to vector<8x32xi1>
    %365 = vector.broadcast %cst_35 : f32 to vector<8x32xf32>
    %366 = arith.select %364, %344, %365 : vector<8x32xi1>, vector<8x32xf32>
    %cst_36 = arith.constant 0.000000e+00 : f32
    %367 = vector.shape_cast %350 : vector<8x1xi1> to vector<8x1xi1>
    %368 = vector.broadcast %367 : vector<8x1xi1> to vector<8x32xi1>
    %369 = vector.broadcast %cst_36 : f32 to vector<8x32xf32>
    %370 = arith.select %368, %346, %369 : vector<8x32xi1>, vector<8x32xf32>
    %371 = vector.extract_strided_slice %7 {offsets = [6, 0, 0], sizes = [1, 8, 128], strides = [1, 1, 1]} : vector<8x8x256xf32> to vector<1x8x128xf32>
    %372 = vector.shape_cast %371 : vector<1x8x128xf32> to vector<8x128xf32>
    %373 = vector.extract_strided_slice %7 {offsets = [1, 0, 128], sizes = [1, 8, 128], strides = [1, 1, 1]} : vector<8x8x256xf32> to vector<1x8x128xf32>
    %374 = vector.shape_cast %373 : vector<1x8x128xf32> to vector<8x128xf32>
    %375 = tpu.concatenate %372, %374 in 1 : vector<8x128xf32>, vector<8x128xf32> -> vector<8x256xf32>
    %376 = tpu.concatenate %353, %359 in 1 : vector<8x32xf32>, vector<8x32xf32> -> vector<8x64xf32>
    %cst_37 = arith.constant dense<0.000000e+00> : vector<8x256xf32>
    %377 = tpu.matmul %376, %24, %cst_37 {dimension_numbers = #tpu.dot_dimension_numbers<[1], [0], [0], [1], [0, 0, 1, 1], [], []>} : vector<8x64xf32>, vector<64x256xf32>, vector<8x256xf32> -> vector<8x256xf32>
    %378 = arith.addf %375, %377 : vector<8x256xf32>
    %379 = math.tanh %378 : vector<8x256xf32>
    %380 = arith.negf %378 : vector<8x256xf32>
    %381 = math.exp %380 : vector<8x256xf32>
    %cst_38 = arith.constant 1.000000e+00 : f32
    %382 = vector.broadcast %cst_38 : f32 to vector<8x256xf32>
    %383 = arith.addf %382, %381 : vector<8x256xf32>
    %384 = arith.divf %382, %383 : vector<8x256xf32>
    %385 = arith.select %23, %379, %384 : vector<8x256xi1>, vector<8x256xf32>
    %386 = vector.extract_strided_slice %385 {offsets = [0, 0], sizes = [8, 32], strides = [1, 1]} : vector<8x256xf32> to vector<8x32xf32>
    %387 = vector.extract_strided_slice %385 {offsets = [0, 32], sizes = [8, 32], strides = [1, 1]} : vector<8x256xf32> to vector<8x32xf32>
    %388 = vector.extract_strided_slice %385 {offsets = [0, 64], sizes = [8, 32], strides = [1, 1]} : vector<8x256xf32> to vector<8x32xf32>
    %389 = vector.extract_strided_slice %385 {offsets = [0, 96], sizes = [8, 32], strides = [1, 1]} : vector<8x256xf32> to vector<8x32xf32>
    %390 = vector.extract_strided_slice %385 {offsets = [0, 128], sizes = [8, 32], strides = [1, 1]} : vector<8x256xf32> to vector<8x32xf32>
    %391 = vector.extract_strided_slice %385 {offsets = [0, 160], sizes = [8, 32], strides = [1, 1]} : vector<8x256xf32> to vector<8x32xf32>
    %392 = vector.extract_strided_slice %385 {offsets = [0, 192], sizes = [8, 32], strides = [1, 1]} : vector<8x256xf32> to vector<8x32xf32>
    %393 = vector.extract_strided_slice %385 {offsets = [0, 224], sizes = [8, 32], strides = [1, 1]} : vector<8x256xf32> to vector<8x32xf32>
    %394 = arith.mulf %387, %356 : vector<8x32xf32>
    %395 = arith.mulf %386, %388 : vector<8x32xf32>
    %396 = arith.addf %394, %395 : vector<8x32xf32>
    %397 = arith.mulf %391, %362 : vector<8x32xf32>
    %398 = arith.mulf %390, %392 : vector<8x32xf32>
    %399 = arith.addf %397, %398 : vector<8x32xf32>
    %400 = math.tanh %396 : vector<8x32xf32>
    %401 = arith.mulf %389, %400 : vector<8x32xf32>
    %402 = math.tanh %399 : vector<8x32xf32>
    %403 = arith.mulf %393, %402 : vector<8x32xf32>
    %404 = vector.extract_strided_slice %11 {offsets = [6, 0, 0], sizes = [1, 8, 1], strides = [1, 1, 1]} : vector<8x8x1xi1> to vector<1x8x1xi1>
    %405 = vector.shape_cast %404 : vector<1x8x1xi1> to vector<8x1xi1>
    %406 = vector.extract_strided_slice %11 {offsets = [1, 0, 0], sizes = [1, 8, 1], strides = [1, 1, 1]} : vector<8x8x1xi1> to vector<1x8x1xi1>
    %407 = vector.shape_cast %406 : vector<1x8x1xi1> to vector<8x1xi1>
    %408 = vector.shape_cast %405 : vector<8x1xi1> to vector<8x1xi1>
    %409 = vector.broadcast %408 : vector<8x1xi1> to vector<8x32xi1>
    %410 = arith.select %409, %401, %353 : vector<8x32xi1>, vector<8x32xf32>
    %411 = vector.shape_cast %405 : vector<8x1xi1> to vector<8x1xi1>
    %412 = vector.broadcast %411 : vector<8x1xi1> to vector<8x32xi1>
    %413 = arith.select %412, %396, %356 : vector<8x32xi1>, vector<8x32xf32>
    %414 = vector.shape_cast %407 : vector<8x1xi1> to vector<8x1xi1>
    %415 = vector.broadcast %414 : vector<8x1xi1> to vector<8x32xi1>
    %416 = arith.select %415, %403, %359 : vector<8x32xi1>, vector<8x32xf32>
    %417 = vector.shape_cast %407 : vector<8x1xi1> to vector<8x1xi1>
    %418 = vector.broadcast %417 : vector<8x1xi1> to vector<8x32xi1>
    %419 = arith.select %418, %399, %362 : vector<8x32xi1>, vector<8x32xf32>
    %cst_39 = arith.constant 0.000000e+00 : f32
    %420 = vector.shape_cast %405 : vector<8x1xi1> to vector<8x1xi1>
    %421 = vector.broadcast %420 : vector<8x1xi1> to vector<8x32xi1>
    %422 = vector.broadcast %cst_39 : f32 to vector<8x32xf32>
    %423 = arith.select %421, %401, %422 : vector<8x32xi1>, vector<8x32xf32>
    %cst_40 = arith.constant 0.000000e+00 : f32
    %424 = vector.shape_cast %407 : vector<8x1xi1> to vector<8x1xi1>
    %425 = vector.broadcast %424 : vector<8x1xi1> to vector<8x32xi1>
    %426 = vector.broadcast %cst_40 : f32 to vector<8x32xf32>
    %427 = arith.select %425, %403, %426 : vector<8x32xi1>, vector<8x32xf32>
    %428 = vector.extract_strided_slice %7 {offsets = [7, 0, 0], sizes = [1, 8, 128], strides = [1, 1, 1]} : vector<8x8x256xf32> to vector<1x8x128xf32>
    %429 = vector.shape_cast %428 : vector<1x8x128xf32> to vector<8x128xf32>
    %430 = vector.extract_strided_slice %7 {offsets = [0, 0, 128], sizes = [1, 8, 128], strides = [1, 1, 1]} : vector<8x8x256xf32> to vector<1x8x128xf32>
    %431 = vector.shape_cast %430 : vector<1x8x128xf32> to vector<8x128xf32>
    %432 = tpu.concatenate %429, %431 in 1 : vector<8x128xf32>, vector<8x128xf32> -> vector<8x256xf32>
    %433 = tpu.concatenate %410, %416 in 1 : vector<8x32xf32>, vector<8x32xf32> -> vector<8x64xf32>
    %cst_41 = arith.constant dense<0.000000e+00> : vector<8x256xf32>
    %434 = tpu.matmul %433, %24, %cst_41 {dimension_numbers = #tpu.dot_dimension_numbers<[1], [0], [0], [1], [0, 0, 1, 1], [], []>} : vector<8x64xf32>, vector<64x256xf32>, vector<8x256xf32> -> vector<8x256xf32>
    %435 = arith.addf %432, %434 : vector<8x256xf32>
    %436 = math.tanh %435 : vector<8x256xf32>
    %437 = arith.negf %435 : vector<8x256xf32>
    %438 = math.exp %437 : vector<8x256xf32>
    %cst_42 = arith.constant 1.000000e+00 : f32
    %439 = vector.broadcast %cst_42 : f32 to vector<8x256xf32>
    %440 = arith.addf %439, %438 : vector<8x256xf32>
    %441 = arith.divf %439, %440 : vector<8x256xf32>
    %442 = arith.select %23, %436, %441 : vector<8x256xi1>, vector<8x256xf32>
    %443 = vector.extract_strided_slice %442 {offsets = [0, 0], sizes = [8, 32], strides = [1, 1]} : vector<8x256xf32> to vector<8x32xf32>
    %444 = vector.extract_strided_slice %442 {offsets = [0, 32], sizes = [8, 32], strides = [1, 1]} : vector<8x256xf32> to vector<8x32xf32>
    %445 = vector.extract_strided_slice %442 {offsets = [0, 64], sizes = [8, 32], strides = [1, 1]} : vector<8x256xf32> to vector<8x32xf32>
    %446 = vector.extract_strided_slice %442 {offsets = [0, 96], sizes = [8, 32], strides = [1, 1]} : vector<8x256xf32> to vector<8x32xf32>
    %447 = vector.extract_strided_slice %442 {offsets = [0, 128], sizes = [8, 32], strides = [1, 1]} : vector<8x256xf32> to vector<8x32xf32>
    %448 = vector.extract_strided_slice %442 {offsets = [0, 160], sizes = [8, 32], strides = [1, 1]} : vector<8x256xf32> to vector<8x32xf32>
    %449 = vector.extract_strided_slice %442 {offsets = [0, 192], sizes = [8, 32], strides = [1, 1]} : vector<8x256xf32> to vector<8x32xf32>
    %450 = vector.extract_strided_slice %442 {offsets = [0, 224], sizes = [8, 32], strides = [1, 1]} : vector<8x256xf32> to vector<8x32xf32>
    %451 = arith.mulf %444, %413 : vector<8x32xf32>
    %452 = arith.mulf %443, %445 : vector<8x32xf32>
    %453 = arith.addf %451, %452 : vector<8x32xf32>
    %454 = arith.mulf %448, %419 : vector<8x32xf32>
    %455 = arith.mulf %447, %449 : vector<8x32xf32>
    %456 = arith.addf %454, %455 : vector<8x32xf32>
    %457 = math.tanh %453 : vector<8x32xf32>
    %458 = arith.mulf %446, %457 : vector<8x32xf32>
    %459 = math.tanh %456 : vector<8x32xf32>
    %460 = arith.mulf %450, %459 : vector<8x32xf32>
    %461 = vector.extract_strided_slice %11 {offsets = [7, 0, 0], sizes = [1, 8, 1], strides = [1, 1, 1]} : vector<8x8x1xi1> to vector<1x8x1xi1>
    %462 = vector.shape_cast %461 : vector<1x8x1xi1> to vector<8x1xi1>
    %463 = vector.extract_strided_slice %11 {offsets = [0, 0, 0], sizes = [1, 8, 1], strides = [1, 1, 1]} : vector<8x8x1xi1> to vector<1x8x1xi1>
    %464 = vector.shape_cast %463 : vector<1x8x1xi1> to vector<8x1xi1>
    %cst_43 = arith.constant 0.000000e+00 : f32
    %465 = vector.shape_cast %462 : vector<8x1xi1> to vector<8x1xi1>
    %466 = vector.broadcast %465 : vector<8x1xi1> to vector<8x32xi1>
    %467 = vector.broadcast %cst_43 : f32 to vector<8x32xf32>
    %468 = arith.select %466, %458, %467 : vector<8x32xi1>, vector<8x32xf32>
    %cst_44 = arith.constant 0.000000e+00 : f32
    %469 = vector.shape_cast %464 : vector<8x1xi1> to vector<8x1xi1>
    %470 = vector.broadcast %469 : vector<8x1xi1> to vector<8x32xi1>
    %471 = vector.broadcast %cst_44 : f32 to vector<8x32xf32>
    %472 = arith.select %470, %460, %471 : vector<8x32xi1>, vector<8x32xf32>
    %473 = tpu.concatenate %81, %472 in 1 : vector<8x32xf32>, vector<8x32xf32> -> vector<8x64xf32>
    %474 = tpu.concatenate %138, %427 in 1 : vector<8x32xf32>, vector<8x32xf32> -> vector<8x64xf32>
    %475 = tpu.concatenate %195, %370 in 1 : vector<8x32xf32>, vector<8x32xf32> -> vector<8x64xf32>
    %476 = tpu.concatenate %252, %313 in 1 : vector<8x32xf32>, vector<8x32xf32> -> vector<8x64xf32>
    %477 = tpu.concatenate %309, %256 in 1 : vector<8x32xf32>, vector<8x32xf32> -> vector<8x64xf32>
    %478 = tpu.concatenate %366, %199 in 1 : vector<8x32xf32>, vector<8x32xf32> -> vector<8x64xf32>
    %479 = tpu.concatenate %423, %142 in 1 : vector<8x32xf32>, vector<8x32xf32> -> vector<8x64xf32>
    %480 = tpu.concatenate %468, %85 in 1 : vector<8x32xf32>, vector<8x32xf32> -> vector<8x64xf32>
    %481 = tpu.concatenate %473, %474, %475, %476, %477, %478, %479, %480 in 0 : vector<8x64xf32>, vector<8x64xf32>, vector<8x64xf32>, vector<8x64xf32>, vector<8x64xf32>, vector<8x64xf32>, vector<8x64xf32>, vector<8x64xf32> -> vector<64x64xf32>
    %c0_45 = arith.constant 0 : index
    %c0_46 = arith.constant 0 : index
    %482 = vector.load %arg5[%c0_45, %c0_46] : memref<64x128xf32, #tpu.memory_space<vmem>>, vector<64x128xf32>
    %cst_47 = arith.constant dense<0.000000e+00> : vector<64x128xf32>
    %483 = tpu.matmul %481, %482, %cst_47 {dimension_numbers = #tpu.dot_dimension_numbers<[1], [0], [0], [1], [0, 0, 1, 1], [], []>} : vector<64x64xf32>, vector<64x128xf32>, vector<64x128xf32> -> vector<64x128xf32>
    %c0_48 = arith.constant 0 : index
    %c0_49 = arith.constant 0 : index
    %484 = vector.load %arg6[%c0_48, %c0_49] : memref<1x128xf32, #tpu.memory_space<vmem>>, vector<1x128xf32>
    %485 = vector.broadcast %484 : vector<1x128xf32> to vector<64x128xf32>
    %486 = arith.addf %483, %485 : vector<64x128xf32>
    %c0_50 = arith.constant 0 : index
    %c0_51 = arith.constant 0 : index
    %487 = vector.load %arg7[%c0_50, %c0_51] : memref<64x128xf32, #tpu.memory_space<vmem>>, vector<64x128xf32>
    tpu.vector_store %arg7[%c0_50, %c0_51], %486 {strides = array<i32>} : memref<64x128xf32, #tpu.memory_space<vmem>>, vector<64x128xf32>,
    return
  }
}

</mosaic_0001>

<llo_original>
// kernel: tpu_custom_call.1
$region0: #{tpu_custom_call.1}
  #allocation0 [shape = 'u32[]', space=smem, size = 0x4, offset = 0x4, fixed_abs, tag = 'smem constant byte address 0x4 - core index']
  #allocation1 [shape = 'u32[144,128]{1,0:T(1,128)}', space=vmem, size = 0x12000, scoped, tag = 'internal scratch']
  %s0 = inlined_call_operand.vmem [shape: f32[64,16], index: 0, kind: input, shape index: {}]
  %s1 = inlined_call_operand.vmem [shape: s32[8,1], index: 1, kind: input, shape index: {}]
  %s2 = inlined_call_operand.vmem [shape: f32[16,256], index: 2, kind: input, shape index: {}]
  %s3 = inlined_call_operand.hbm [shape: f32[64,256], index: 3, kind: input, shape index: {}]
  %s4 = inlined_call_operand.vmem [shape: f32[1,256], index: 4, kind: input, shape index: {}]
  %s5 = inlined_call_operand.vmem [shape: f32[64,128], index: 5, kind: input, shape index: {}]
  %s6 = inlined_call_operand.vmem [shape: f32[1,128], index: 6, kind: input, shape index: {}]
  %s7 = inlined_call_operand.hbm [shape: f32[64,128], index: 7, kind: output, shape index: {}]
  %s8 = sld [smem:[#allocation0]]
  $region42: #{tpu_custom_call.1} parent=0
    _
  %s10 = ssub.s32 1, %s8
  %s11 = scalar_select 0, %s10, %s8
  $region1: #{tpu_custom_call.1} parent=0
    #allocation2 [shape = 'u8[65536]{0}', space=vmem, size = 0x10000, scoped, tag = 'input window, operand 3, single buffered']
    #allocation3 [shape = 's32[1]{0}', space=sflag, size = 0x4, scoped, tag = 'scoped memory for tpu_custom_call.1']
    #allocation4 [shape = 's32[1]{0}', space=sflag, size = 0x4, scoped, tag = 'scoped memory for tpu_custom_call.1']
    #allocation5 [shape = 'u8[32768]{0}', space=vmem, size = 0x8000, scoped, tag = 'output window, operand 0, single buffered']
    %12 = vsyncpa [#allocation3], 0
    %13 = vsyncpa [#allocation4], 0
    // Predicated region
    $region2: #{tpu_custom_call.1} parent=1 // pred_check
      _
    $region3: #{tpu_custom_call.1} parent=1 // pred_check_branch
      %15 = sbr.rel (0) target = $region5
    $region4: #{tpu_custom_call.1} parent=1 // pred_region
      _
    $region5: #{tpu_custom_call.1} parent=1 // pred_fallthru
      _
    // Predicated region
    $region6: #{tpu_custom_call.1} parent=1 // pred_check
      _
    $region7: #{tpu_custom_call.1} parent=1 // pred_check_branch
      %17 = sbr.rel (0) target = $region9
    $region8: #{tpu_custom_call.1} parent=1 // pred_region
      _
    $region9: #{tpu_custom_call.1} parent=1 // pred_fallthru
      _
    // Predicated region
    $region10: #{tpu_custom_call.1} parent=1 // pred_check
      _
    $region11: #{tpu_custom_call.1} parent=1 // pred_check_branch
      %19 = sbr.rel (0) target = $region13
    $region12: #{tpu_custom_call.1} parent=1 // pred_region
      _
    $region13: #{tpu_custom_call.1} parent=1 // pred_fallthru
      _
    // Predicated region
    $region14: #{tpu_custom_call.1} parent=1 // pred_check
      _
    $region15: #{tpu_custom_call.1} parent=1 // pred_check_branch
      %21 = sbr.rel (0) target = $region17
    $region16: #{tpu_custom_call.1} parent=1 // pred_region
      %s23 = ssub.s32 2048, 2048
      %24 = vsyncadd [#allocation3], %s23
      %s25 = sshll.u32 [#allocation2], 4
      %s26 = int_to_ptr.vmem [resolvable:$true] %s25
      %31 = dma.hbm_to_vmem [thread:$0]  %s3, 2048, %s26, [#allocation3], 256, 256, 16
    $region17: #{tpu_custom_call.1} parent=1 // pred_fallthru
      _
    // Predicated region
    $region18: #{tpu_custom_call.1} parent=1 // pred_check
      _
    $region19: #{tpu_custom_call.1} parent=1 // pred_check_branch
      %33 = sbr.rel (0) target = $region21
    $region20: #{tpu_custom_call.1} parent=1 // pred_region
      _
    $region21: #{tpu_custom_call.1} parent=1 // pred_fallthru
      _
    // Predicated region
    $region22: #{tpu_custom_call.1} parent=1 // pred_check
      _
    $region23: #{tpu_custom_call.1} parent=1 // pred_check_branch
      %35 = sbr.rel (0) target = $region25
    $region24: #{tpu_custom_call.1} parent=1 // pred_region
      _
    $region25: #{tpu_custom_call.1} parent=1 // pred_fallthru
      _
    // Predicated region
    $region26: #{tpu_custom_call.1} parent=1 // pred_check
      _
    $region27: #{tpu_custom_call.1} parent=1 // pred_check_branch
      %37 = sbr.rel (0) target = $region29
    $region28: #{tpu_custom_call.1} parent=1 // pred_region
      _
    $region29: #{tpu_custom_call.1} parent=1 // pred_fallthru
      _
    // Predicated region
    $region30: #{tpu_custom_call.1} parent=1 // pred_check
      _
    $region31: #{tpu_custom_call.1} parent=1 // pred_check_branch
      %39 = sbr.rel (0) target = $region33
    $region32: #{tpu_custom_call.1} parent=1 // pred_region
      %40 = dma.done [#allocation3], 2048
    $region33: #{tpu_custom_call.1} parent=1 // pred_fallthru
      _
    %v41 = vld [vmem:[%s1] sm:$0xff]
    %v42 = vld [vmem:[%s0] sm:$0xff]
    %v43 = vld [vmem:[%s0 + $0x8] sm:$0xff]
    %v44 = vld [vmem:[%s0 + $0x10] sm:$0xff]
    %v45 = vld [vmem:[%s0 + $0x18] sm:$0xff]
    %v46 = vld [vmem:[%s0 + $0x20] sm:$0xff]
    %v47 = vld [vmem:[%s0 + $0x28] sm:$0xff]
    %v48 = vld [vmem:[%s0 + $0x30] sm:$0xff]
    %v49 = vld [vmem:[%s0 + $0x38] sm:$0xff]
    %v50 = vld [vmem:[%s2] sm:$0xff]
    %v51 = vld [vmem:[%s2 + $0x8] sm:$0xff]
    %v52 = vld [vmem:[%s2 + $0x10] sm:$0xff]
    %v53 = vld [vmem:[%s2 + $0x18] sm:$0xff]
    %v54 = vld [vmem:[%s4] sm:$0x3]
    %v56 = vlaneseq
    %v57 = vshrl.u32 %v56, 7
    %v58 = vsub.s32 0, %v57
    %v59 = vrot.slane %v54, %v58
    %v60 = vlaneseq
    %v61 = vshrl.u32 %v60, 7
    %v62 = vsub.s32 1, %v61
    %v63 = vrot.slane %v54, %v62
    %vm66 = vcmask 130048
    %v68 = vsel %vm66, %v42, 0
    %v71 = vsel %vm66, %v43, 0
    %v74 = vsel %vm66, %v44, 0
    %v77 = vsel %vm66, %v45, 0
    %v80 = vsel %vm66, %v46, 0
    %v83 = vsel %vm66, %v47, 0
    %v86 = vsel %vm66, %v48, 0
    %v89 = vsel %vm66, %v49, 0
    %91 = vmatprep.subr.mxu0 %v51
    %92 = vmatpush1.msra.mxu0 %v50
    %93 = vmatprep.subr.mxu0 %v53
    %94 = vmatpush1.msra.mxu0 %v52
    %95 = vmatprep.subr.mxu0 0.0
    %96 = vmatpush1.msra.mxu0 0.0
    %97 = vmatprep.subr.mxu0 0.0
    %98 = vmatpush1.msra.mxu0 0.0
    %99 = vmatprep.subr.mxu0 0.0
    %100 = vmatpush1.msra.mxu0 0.0
    %101 = vmatprep.subr.mxu0 0.0
    %102 = vmatpush1.msra.mxu0 0.0
    %103 = vmatprep.subr.mxu0 0.0
    %104 = vmatpush1.msra.mxu0 0.0
    %105 = vmatprep.subr.mxu0 0.0
    %106 = vmatpush1.msra.mxu0 0.0
    %107 = vmatprep.subr.mxu0 0.0
    %108 = vmatpush1.msra.mxu0 0.0
    %109 = vmatprep.subr.mxu0 0.0
    %110 = vmatpush1.msra.mxu0 0.0
    %111 = vmatprep.subr.mxu0 0.0
    %112 = vmatpush1.msra.mxu0 0.0
    %113 = vmatprep.subr.mxu0 0.0
    %114 = vmatpush1.msra.mxu0 0.0
    %115 = vmatprep.subr.mxu0 0.0
    %116 = vmatpush1.msra.mxu0 0.0
    %117 = vmatprep.subr.mxu0 0.0
    %118 = vmatpush1.msra.mxu0 0.0
    %119 = vmatprep.subr.mxu0 0.0
    %120 = vmatpush1.msra.mxu0 0.0
    %121 = vmatprep.subr.mxu0 0.0
    %122 = vmatpush1.msra.mxu0 0.0
    %123 = vmatprep.subr.mxu0 0.0
    %124 = vmatpush1.msra.mxu0 0.0
    %125 = vmatprep.subr.mxu0 0.0
    %126 = vmatpush1.msra.mxu0 0.0
    %127 = vmatprep.subr.mxu0 0.0
    %128 = vmatpush1.msra.mxu0 0.0
    %129 = vmatprep.subr.mxu0 0.0
    %130 = vmatpush1.msra.mxu0 0.0
    %131 = vmatprep.subr.mxu0 0.0
    %132 = vmatpush1.msra.mxu0 0.0
    %133 = vmatprep.subr.mxu0 0.0
    %134 = vmatpush1.msra.mxu0 0.0
    %135 = vmatprep.subr.mxu0 0.0
    %136 = vmatpush1.msra.mxu0 0.0
    %137 = vmatprep.subr.mxu0 0.0
    %138 = vmatpush1.msra.mxu0 0.0
    %139 = vmatprep.subr.mxu0 0.0
    %140 = vmatpush1.msra.mxu0 0.0
    %141 = vmatprep.subr.mxu0 0.0
    %142 = vmatpush1.msra.mxu0 0.0
    %143 = vmatprep.subr.mxu0 0.0
    %144 = vmatpush1.msra.mxu0 0.0
    %145 = vmatprep.subr.mxu0 0.0
    %146 = vmatpush1.msra.mxu0 0.0
    %147 = vmatprep.subr.mxu0 0.0
    %148 = vmatpush1.msra.mxu0 0.0
    %149 = vmatprep.subr.mxu0 0.0
    %150 = vmatpush1.msra.mxu0 0.0
    %151 = vmatprep.subr.mxu0 0.0
    %152 = vmatpush1.msra.mxu0 0.0
    %153 = vmatprep.subr.mxu0 0.0
    %154 = vmatpush1.msra.mxu0 0.0
    %155 = vmatprep.mubr.f32.mxu0 0.0
    %156 = vmatmul.mubr.f32.gmra.mrb[0].mxu0 %v68
    %v157 = vpop.f32.mrb[0].mxu0
    %v158 = vadd.f32 %v59, %v157
    %v159 = vpop.f32.mrb[0].mxu0
    %v160 = vadd.f32 %v63, %v159
    %161 = vmatprep.mubr.f32.mxu0 0.0
    %162 = vmatmul.mubr.f32.gmra.mrb[0].mxu0 %v71
    %v163 = vpop.f32.mrb[0].mxu0
    %v164 = vadd.f32 %v59, %v163
    %v165 = vpop.f32.mrb[0].mxu0
    %v166 = vadd.f32 %v63, %v165
    %167 = vmatprep.mubr.f32.mxu0 0.0
    %168 = vmatmul.mubr.f32.gmra.mrb[0].mxu0 %v74
    %v169 = vpop.f32.mrb[0].mxu0
    %v170 = vadd.f32 %v59, %v169
    %v171 = vpop.f32.mrb[0].mxu0
    %v172 = vadd.f32 %v63, %v171
    %173 = vmatprep.mubr.f32.mxu0 0.0
    %174 = vmatmul.mubr.f32.gmra.mrb[0].mxu0 %v77
    %v175 = vpop.f32.mrb[0].mxu0
    %v176 = vadd.f32 %v59, %v175
    %v177 = vpop.f32.mrb[0].mxu0
    %v178 = vadd.f32 %v63, %v177
    %179 = vmatprep.mubr.f32.mxu0 0.0
    %180 = vmatmul.mubr.f32.gmra.mrb[0].mxu0 %v80
    %v181 = vpop.f32.mrb[0].mxu0
    %v182 = vadd.f32 %v59, %v181
    %v183 = vpop.f32.mrb[0].mxu0
    %v184 = vadd.f32 %v63, %v183
    %185 = vmatprep.mubr.f32.mxu0 0.0
    %186 = vmatmul.mubr.f32.gmra.mrb[0].mxu0 %v83
    %v187 = vpop.f32.mrb[0].mxu0
    %v188 = vadd.f32 %v59, %v187
    %v189 = vpop.f32.mrb[0].mxu0
    %v190 = vadd.f32 %v63, %v189
    %191 = vmatprep.mubr.f32.mxu0 0.0
    %192 = vmatmul.mubr.f32.gmra.mrb[0].mxu0 %v86
    %v193 = vpop.f32.mrb[0].mxu0
    %v194 = vadd.f32 %v59, %v193
    %v195 = vpop.f32.mrb[0].mxu0
    %v196 = vadd.f32 %v63, %v195
    %197 = vmatprep.mubr.f32.mxu0 0.0
    %198 = vmatmul.mubr.f32.gmra.mrb[0].mxu0 %v89
    %v199 = vpop.f32.mrb[0].mxu0
    %v200 = vadd.f32 %v59, %v199
    %v201 = vpop.f32.mrb[0].mxu0
    %v202 = vadd.f32 %v63, %v201
    %203 = vdwg.mxu0
    %vm204 = vcmp.gt.s32.totalorder %v41, 0
    %vm205 = vcmp.gt.s32.totalorder %v41, 1
    %vm206 = vcmp.gt.s32.totalorder %v41, 2
    %vm207 = vcmp.gt.s32.totalorder %v41, 3
    %vm208 = vcmp.gt.s32.totalorder %v41, 4
    %vm209 = vcmp.gt.s32.totalorder %v41, 5
    %vm210 = vcmp.gt.s32.totalorder %v41, 6
    %vm211 = vcmp.gt.s32.totalorder %v41, 7
    %v212 = vlaneseq
    %v213 = vand.u32 %v212, 127
    %v214 = vadd.s32 %v213, 128
    %vm215 = vcmp.ge.s32.totalorder %v213, 64
    %vm216 = vcmp.ge.s32.totalorder %v214, 64
    %vm217 = vcmp.lt.s32.totalorder %v213, 96
    %vm218 = vcmp.lt.s32.totalorder %v214, 96
    %vm219 = vmand %vm215, %vm217
    %vm220 = vmand %vm216, %vm218
    %vm221 = vcmp.ge.s32.totalorder %v213, 192
    %vm222 = vcmp.ge.s32.totalorder %v214, 192
    %vm223 = vcmp.lt.s32.totalorder %v213, 224
    %vm224 = vcmp.lt.s32.totalorder %v214, 224
    %vm225 = vmand %vm221, %vm223
    %vm226 = vmand %vm222, %vm224
    %vm227 = vmor %vm219, %vm225
    %vm228 = vmor %vm220, %vm226
    %v229 = vld [vmem:[#allocation2] sm:$0xff]
    %v230 = vld [vmem:[#allocation2 + $0x8] sm:$0xff]
    %v231 = vld [vmem:[#allocation2 + $0x10] sm:$0xff]
    %v232 = vld [vmem:[#allocation2 + $0x18] sm:$0xff]
    %v233 = vld [vmem:[#allocation2 + $0x20] sm:$0xff]
    %v234 = vld [vmem:[#allocation2 + $0x28] sm:$0xff]
    %v235 = vld [vmem:[#allocation2 + $0x30] sm:$0xff]
    %v236 = vld [vmem:[#allocation2 + $0x38] sm:$0xff]
    %v237 = vld [vmem:[#allocation2 + $0x40] sm:$0xff]
    %v238 = vld [vmem:[#allocation2 + $0x48] sm:$0xff]
    %v239 = vld [vmem:[#allocation2 + $0x50] sm:$0xff]
    %v240 = vld [vmem:[#allocation2 + $0x58] sm:$0xff]
    %v241 = vld [vmem:[#allocation2 + $0x60] sm:$0xff]
    %v242 = vld [vmem:[#allocation2 + $0x68] sm:$0xff]
    %v243 = vld [vmem:[#allocation2 + $0x70] sm:$0xff]
    %v244 = vld [vmem:[#allocation2 + $0x78] sm:$0xff]
    %vm245 = vcmask 523264
    %v247 = vsel %vm245, 0.0, 0
    %249 = vmatprep.subr.mxu0 %v230
    %250 = vmatpush1.msra.mxu0 %v229
    %251 = vmatprep.subr.mxu0 %v232
    %252 = vmatpush1.msra.mxu0 %v231
    %253 = vmatprep.subr.mxu0 %v234
    %254 = vmatpush1.msra.mxu0 %v233
    %255 = vmatprep.subr.mxu0 %v236
    %256 = vmatpush1.msra.mxu0 %v235
    %257 = vmatprep.subr.mxu0 %v238
    %258 = vmatpush1.msra.mxu0 %v237
    %259 = vmatprep.subr.mxu0 %v240
    %260 = vmatpush1.msra.mxu0 %v239
    %261 = vmatprep.subr.mxu0 %v242
    %262 = vmatpush1.msra.mxu0 %v241
    %263 = vmatprep.subr.mxu0 %v244
    %264 = vmatpush1.msra.mxu0 %v243
    %265 = vmatprep.subr.mxu0 0.0
    %266 = vmatpush1.msra.mxu0 0.0
    %267 = vmatprep.subr.mxu0 0.0
    %268 = vmatpush1.msra.mxu0 0.0
    %269 = vmatprep.subr.mxu0 0.0
    %270 = vmatpush1.msra.mxu0 0.0
    %271 = vmatprep.subr.mxu0 0.0
    %272 = vmatpush1.msra.mxu0 0.0
    %273 = vmatprep.subr.mxu0 0.0
    %274 = vmatpush1.msra.mxu0 0.0
    %275 = vmatprep.subr.mxu0 0.0
    %276 = vmatpush1.msra.mxu0 0.0
    %277 = vmatprep.subr.mxu0 0.0
    %278 = vmatpush1.msra.mxu0 0.0
    %279 = vmatprep.subr.mxu0 0.0
    %280 = vmatpush1.msra.mxu0 0.0
    %281 = vmatprep.subr.mxu0 0.0
    %282 = vmatpush1.msra.mxu0 0.0
    %283 = vmatprep.subr.mxu0 0.0
    %284 = vmatpush1.msra.mxu0 0.0
    %285 = vmatprep.subr.mxu0 0.0
    %286 = vmatpush1.msra.mxu0 0.0
    %287 = vmatprep.subr.mxu0 0.0
    %288 = vmatpush1.msra.mxu0 0.0
    %289 = vmatprep.subr.mxu0 0.0
    %290 = vmatpush1.msra.mxu0 0.0
    %291 = vmatprep.subr.mxu0 0.0
    %292 = vmatpush1.msra.mxu0 0.0
    %293 = vmatprep.subr.mxu0 0.0
    %294 = vmatpush1.msra.mxu0 0.0
    %295 = vmatprep.subr.mxu0 0.0
    %296 = vmatpush1.msra.mxu0 0.0
    %297 = vmatprep.subr.mxu0 0.0
    %298 = vmatpush1.msra.mxu0 0.0
    %299 = vmatprep.subr.mxu0 0.0
    %300 = vmatpush1.msra.mxu0 0.0
    %301 = vmatprep.subr.mxu0 0.0
    %302 = vmatpush1.msra.mxu0 0.0
    %303 = vmatprep.subr.mxu0 0.0
    %304 = vmatpush1.msra.mxu0 0.0
    %305 = vmatprep.subr.mxu0 0.0
    %306 = vmatpush1.msra.mxu0 0.0
    %307 = vmatprep.subr.mxu0 0.0
    %308 = vmatpush1.msra.mxu0 0.0
    %309 = vmatprep.subr.mxu0 0.0
    %310 = vmatpush1.msra.mxu0 0.0
    %311 = vmatprep.subr.mxu0 0.0
    %312 = vmatpush1.msra.mxu0 0.0
    %313 = vmatprep.mubr.f32.mxu0 0.0
    %314 = vmatmul.mubr.f32.gmra.mrb[0].mxu0 %v247
    %v315 = vpop.f32.mrb[0].mxu0
    %v316 = vadd.f32 0.0, %v315
    %v317 = vpop.f32.mrb[0].mxu0
    %v318 = vadd.f32 0.0, %v317
    %319 = vdwg.mxu0
    %v320 = vadd.f32 %v158, %v316
    %v321 = vadd.f32 %v202, %v318
    %v322 = vtanh.pop %v320
    %v323 = vtanh.pop %v321
    %v324 = vxor.u32 %v320, 2147483648
    %v325 = vxor.u32 %v321, 2147483648
    %v326 = vmul.f32 %v324, 1.442695
    %v327 = vpow.pop %v326
    %v328 = vmul.f32 %v325, 1.442695
    %v329 = vpow.pop %v328
    %v330 = vadd.f32 %v327, 1.0
    %v331 = vadd.f32 %v329, 1.0
    %v332 = vrcp.pop %v330
    %v333 = vmul.f32 1.0, %v332
    %v334 = vrcp.pop %v331
    %v335 = vmul.f32 1.0, %v334
    %v336 = vsel %vm227, %v322, %v333
    %v337 = vsel %vm228, %v323, %v335
    %v338 = vmul.f32 %v336, 0.0
    %340 = vrot.lane.b32.xlu0 %v336, 64
    %v341 = vpop.permute.xlu0 %340
    %v343 = vmul.f32 %v336, %v341
    %345 = vrot.lane.b32.xlu0 %v343, 32
    %v346 = vpop.permute.xlu0 %345
    %v348 = vadd.f32 %v338, %v346
    %v349 = vmul.f32 %v337, 0.0
    %351 = vrot.lane.b32.xlu0 %v337, 64
    %v352 = vpop.permute.xlu0 %351
    %v354 = vmul.f32 %v337, %v352
    %356 = vrot.lane.b32.xlu0 %v354, 32
    %v357 = vpop.permute.xlu0 %356
    %v359 = vadd.f32 %v349, %v357
    %v360 = vtanh.pop %v348
    %362 = vrot.lane.b32.xlu0 %v360, 64
    %v363 = vpop.permute.xlu0 %362
    %v365 = vmul.f32 %v336, %v363
    %v366 = vtanh.pop %v359
    %368 = vrot.lane.b32.xlu0 %v366, 64
    %v369 = vpop.permute.xlu0 %368
    %v371 = vmul.f32 %v337, %v369
    %v372 = vsel %vm204, 1, 0
    %373 = vset.pattern.permute.xlu0 0
    %374 = vperm.xlu0 %373, %v372
    %v375 = vpop.permute.xlu0 %374
    %vm376 = vcmp.eq.s32.totalorder %v375, 1
    %v377 = vsel %vm376, %v365, 0.0
    %v378 = vsel %vm376, %v348, 0.0
    %v379 = vsel %vm211, 1, 0
    %380 = vset.pattern.permute.xlu0 0
    %381 = vperm.xlu0 %380, %v379
    %v382 = vpop.permute.xlu0 %381
    %vm383 = vcmp.eq.s32.totalorder %v382, 1
    %v384 = vsel %vm383, %v371, 0.0
    %v385 = vsel %vm383, %v359, 0.0
    %387 = vrot.lane.b32.xlu0 %v377, 32
    %v388 = vpop.permute.xlu0 %387
    %391 = vrot.lane.b32.xlu0 %v384, 64
    %v392 = vpop.permute.xlu0 %391
    %vm394 = vcmask 261120
    %v395 = vsel %vm394, %v388, %v392
    %v397 = vsel %vm245, %v395, 0
    %399 = vmatprep.subr.mxu0 %v230
    %400 = vmatpush1.msra.mxu0 %v229
    %401 = vmatprep.subr.mxu0 %v232
    %402 = vmatpush1.msra.mxu0 %v231
    %403 = vmatprep.subr.mxu0 %v234
    %404 = vmatpush1.msra.mxu0 %v233
    %405 = vmatprep.subr.mxu0 %v236
    %406 = vmatpush1.msra.mxu0 %v235
    %407 = vmatprep.subr.mxu0 %v238
    %408 = vmatpush1.msra.mxu0 %v237
    %409 = vmatprep.subr.mxu0 %v240
    %410 = vmatpush1.msra.mxu0 %v239
    %411 = vmatprep.subr.mxu0 %v242
    %412 = vmatpush1.msra.mxu0 %v241
    %413 = vmatprep.subr.mxu0 %v244
    %414 = vmatpush1.msra.mxu0 %v243
    %415 = vmatprep.subr.mxu0 0.0
    %416 = vmatpush1.msra.mxu0 0.0
    %417 = vmatprep.subr.mxu0 0.0
    %418 = vmatpush1.msra.mxu0 0.0
    %419 = vmatprep.subr.mxu0 0.0
    %420 = vmatpush1.msra.mxu0 0.0
    %421 = vmatprep.subr.mxu0 0.0
    %422 = vmatpush1.msra.mxu0 0.0
    %423 = vmatprep.subr.mxu0 0.0
    %424 = vmatpush1.msra.mxu0 0.0
    %425 = vmatprep.subr.mxu0 0.0
    %426 = vmatpush1.msra.mxu0 0.0
    %427 = vmatprep.subr.mxu0 0.0
    %428 = vmatpush1.msra.mxu0 0.0
    %429 = vmatprep.subr.mxu0 0.0
    %430 = vmatpush1.msra.mxu0 0.0
    %431 = vmatprep.subr.mxu0 0.0
    %432 = vmatpush1.msra.mxu0 0.0
    %433 = vmatprep.subr.mxu0 0.0
    %434 = vmatpush1.msra.mxu0 0.0
    %435 = vmatprep.subr.mxu0 0.0
    %436 = vmatpush1.msra.mxu0 0.0
    %437 = vmatprep.subr.mxu0 0.0
    %438 = vmatpush1.msra.mxu0 0.0
    %439 = vmatprep.subr.mxu0 0.0
    %440 = vmatpush1.msra.mxu0 0.0
    %441 = vmatprep.subr.mxu0 0.0
    %442 = vmatpush1.msra.mxu0 0.0
    %443 = vmatprep.subr.mxu0 0.0
    %444 = vmatpush1.msra.mxu0 0.0
    %445 = vmatprep.subr.mxu0 0.0
    %446 = vmatpush1.msra.mxu0 0.0
    %447 = vmatprep.subr.mxu0 0.0
    %448 = vmatpush1.msra.mxu0 0.0
    %449 = vmatprep.subr.mxu0 0.0
    %450 = vmatpush1.msra.mxu0 0.0
    %451 = vmatprep.subr.mxu0 0.0
    %452 = vmatpush1.msra.mxu0 0.0
    %453 = vmatprep.subr.mxu0 0.0
    %454 = vmatpush1.msra.mxu0 0.0
    %455 = vmatprep.subr.mxu0 0.0
    %456 = vmatpush1.msra.mxu0 0.0
    %457 = vmatprep.subr.mxu0 0.0
    %458 = vmatpush1.msra.mxu0 0.0
    %459 = vmatprep.subr.mxu0 0.0
    %460 = vmatpush1.msra.mxu0 0.0
    %461 = vmatprep.subr.mxu0 0.0
    %462 = vmatpush1.msra.mxu0 0.0
    %463 = vmatprep.mubr.f32.mxu0 0.0
    %464 = vmatmul.mubr.f32.gmra.mrb[0].mxu0 %v397
    %v465 = vpop.f32.mrb[0].mxu0
    %v466 = vadd.f32 0.0, %v465
    %v467 = vpop.f32.mrb[0].mxu0
    %v468 = vadd.f32 0.0, %v467
    %469 = vdwg.mxu0
    %v470 = vadd.f32 %v164, %v466
    %v471 = vadd.f32 %v196, %v468
    %v472 = vtanh.pop %v470
    %v473 = vtanh.pop %v471
    %v474 = vxor.u32 %v470, 2147483648
    %v475 = vxor.u32 %v471, 2147483648
    %v476 = vmul.f32 %v474, 1.442695
    %v477 = vpow.pop %v476
    %v478 = vmul.f32 %v475, 1.442695
    %v479 = vpow.pop %v478
    %v480 = vadd.f32 %v477, 1.0
    %v481 = vadd.f32 %v479, 1.0
    %v482 = vrcp.pop %v480
    %v483 = vmul.f32 1.0, %v482
    %v484 = vrcp.pop %v481
    %v485 = vmul.f32 1.0, %v484
    %v486 = vsel %vm227, %v472, %v483
    %v487 = vsel %vm228, %v473, %v485
    %v488 = vmul.f32 %v486, %v378
    %490 = vrot.lane.b32.xlu0 %v486, 64
    %v491 = vpop.permute.xlu0 %490
    %v493 = vmul.f32 %v486, %v491
    %495 = vrot.lane.b32.xlu0 %v493, 32
    %v496 = vpop.permute.xlu0 %495
    %v498 = vadd.f32 %v488, %v496
    %v499 = vmul.f32 %v487, %v385
    %501 = vrot.lane.b32.xlu0 %v487, 64
    %v502 = vpop.permute.xlu0 %501
    %v504 = vmul.f32 %v487, %v502
    %506 = vrot.lane.b32.xlu0 %v504, 32
    %v507 = vpop.permute.xlu0 %506
    %v509 = vadd.f32 %v499, %v507
    %v510 = vtanh.pop %v498
    %512 = vrot.lane.b32.xlu0 %v510, 64
    %v513 = vpop.permute.xlu0 %512
    %v515 = vmul.f32 %v486, %v513
    %v516 = vtanh.pop %v509
    %518 = vrot.lane.b32.xlu0 %v516, 64
    %v519 = vpop.permute.xlu0 %518
    %v521 = vmul.f32 %v487, %v519
    %v522 = vsel %vm205, 1, 0
    %523 = vset.pattern.permute.xlu0 0
    %524 = vperm.xlu0 %523, %v522
    %v525 = vpop.permute.xlu0 %524
    %vm526 = vcmp.eq.s32.totalorder %v525, 1
    %v527 = vsel %vm526, %v515, %v377
    %v528 = vsel %vm526, %v498, %v378
    %v529 = vsel %vm210, 1, 0
    %530 = vset.pattern.permute.xlu0 0
    %531 = vperm.xlu0 %530, %v529
    %v532 = vpop.permute.xlu0 %531
    %vm533 = vcmp.eq.s32.totalorder %v532, 1
    %v534 = vsel %vm533, %v521, %v384
    %v535 = vsel %vm533, %v509, %v385
    %v536 = vsel %vm526, %v515, 0.0
    %v537 = vsel %vm533, %v521, 0.0
    %539 = vrot.lane.b32.xlu0 %v527, 32
    %v540 = vpop.permute.xlu0 %539
    %543 = vrot.lane.b32.xlu0 %v534, 64
    %v544 = vpop.permute.xlu0 %543
    %v546 = vsel %vm394, %v540, %v544
    %v548 = vsel %vm245, %v546, 0
    %550 = vmatprep.subr.mxu0 %v230
    %551 = vmatpush1.msra.mxu0 %v229
    %552 = vmatprep.subr.mxu0 %v232
    %553 = vmatpush1.msra.mxu0 %v231
    %554 = vmatprep.subr.mxu0 %v234
    %555 = vmatpush1.msra.mxu0 %v233
    %556 = vmatprep.subr.mxu0 %v236
    %557 = vmatpush1.msra.mxu0 %v235
    %558 = vmatprep.subr.mxu0 %v238
    %559 = vmatpush1.msra.mxu0 %v237
    %560 = vmatprep.subr.mxu0 %v240
    %561 = vmatpush1.msra.mxu0 %v239
    %562 = vmatprep.subr.mxu0 %v242
    %563 = vmatpush1.msra.mxu0 %v241
    %564 = vmatprep.subr.mxu0 %v244
    %565 = vmatpush1.msra.mxu0 %v243
    %566 = vmatprep.subr.mxu0 0.0
    %567 = vmatpush1.msra.mxu0 0.0
    %568 = vmatprep.subr.mxu0 0.0
    %569 = vmatpush1.msra.mxu0 0.0
    %570 = vmatprep.subr.mxu0 0.0
    %571 = vmatpush1.msra.mxu0 0.0
    %572 = vmatprep.subr.mxu0 0.0
    %573 = vmatpush1.msra.mxu0 0.0
    %574 = vmatprep.subr.mxu0 0.0
    %575 = vmatpush1.msra.mxu0 0.0
    %576 = vmatprep.subr.mxu0 0.0
    %577 = vmatpush1.msra.mxu0 0.0
    %578 = vmatprep.subr.mxu0 0.0
    %579 = vmatpush1.msra.mxu0 0.0
    %580 = vmatprep.subr.mxu0 0.0
    %581 = vmatpush1.msra.mxu0 0.0
    %582 = vmatprep.subr.mxu0 0.0
    %583 = vmatpush1.msra.mxu0 0.0
    %584 = vmatprep.subr.mxu0 0.0
    %585 = vmatpush1.msra.mxu0 0.0
    %586 = vmatprep.subr.mxu0 0.0
    %587 = vmatpush1.msra.mxu0 0.0
    %588 = vmatprep.subr.mxu0 0.0
    %589 = vmatpush1.msra.mxu0 0.0
    %590 = vmatprep.subr.mxu0 0.0
    %591 = vmatpush1.msra.mxu0 0.0
    %592 = vmatprep.subr.mxu0 0.0
    %593 = vmatpush1.msra.mxu0 0.0
    %594 = vmatprep.subr.mxu0 0.0
    %595 = vmatpush1.msra.mxu0 0.0
    %596 = vmatprep.subr.mxu0 0.0
    %597 = vmatpush1.msra.mxu0 0.0
    %598 = vmatprep.subr.mxu0 0.0
    %599 = vmatpush1.msra.mxu0 0.0
    %600 = vmatprep.subr.mxu0 0.0
    %601 = vmatpush1.msra.mxu0 0.0
    %602 = vmatprep.subr.mxu0 0.0
    %603 = vmatpush1.msra.mxu0 0.0
    %604 = vmatprep.subr.mxu0 0.0
    %605 = vmatpush1.msra.mxu0 0.0
    %606 = vmatprep.subr.mxu0 0.0
    %607 = vmatpush1.msra.mxu0 0.0
    %608 = vmatprep.subr.mxu0 0.0
    %609 = vmatpush1.msra.mxu0 0.0
    %610 = vmatprep.subr.mxu0 0.0
    %611 = vmatpush1.msra.mxu0 0.0
    %612 = vmatprep.subr.mxu0 0.0
    %613 = vmatpush1.msra.mxu0 0.0
    %614 = vmatprep.mubr.f32.mxu0 0.0
    %615 = vmatmul.mubr.f32.gmra.mrb[0].mxu0 %v548
    %v616 = vpop.f32.mrb[0].mxu0
    %v617 = vadd.f32 0.0, %v616
    %v618 = vpop.f32.mrb[0].mxu0
    %v619 = vadd.f32 0.0, %v618
    %620 = vdwg.mxu0
    %v621 = vadd.f32 %v170, %v617
    %v622 = vadd.f32 %v190, %v619
    %v623 = vtanh.pop %v621
    %v624 = vtanh.pop %v622
    %v625 = vxor.u32 %v621, 2147483648
    %v626 = vxor.u32 %v622, 2147483648
    %v627 = vmul.f32 %v625, 1.442695
    %v628 = vpow.pop %v627
    %v629 = vmul.f32 %v626, 1.442695
    %v630 = vpow.pop %v629
    %v631 = vadd.f32 %v628, 1.0
    %v632 = vadd.f32 %v630, 1.0
    %v633 = vrcp.pop %v631
    %v634 = vmul.f32 1.0, %v633
    %v635 = vrcp.pop %v632
    %v636 = vmul.f32 1.0, %v635
    %v637 = vsel %vm227, %v623, %v634
    %v638 = vsel %vm228, %v624, %v636
    %v639 = vmul.f32 %v637, %v528
    %641 = vrot.lane.b32.xlu0 %v637, 64
    %v642 = vpop.permute.xlu0 %641
    %v644 = vmul.f32 %v637, %v642
    %646 = vrot.lane.b32.xlu0 %v644, 32
    %v647 = vpop.permute.xlu0 %646
    %v649 = vadd.f32 %v639, %v647
    %v650 = vmul.f32 %v638, %v535
    %652 = vrot.lane.b32.xlu0 %v638, 64
    %v653 = vpop.permute.xlu0 %652
    %v655 = vmul.f32 %v638, %v653
    %657 = vrot.lane.b32.xlu0 %v655, 32
    %v658 = vpop.permute.xlu0 %657
    %v660 = vadd.f32 %v650, %v658
    %v661 = vtanh.pop %v649
    %663 = vrot.lane.b32.xlu0 %v661, 64
    %v664 = vpop.permute.xlu0 %663
    %v666 = vmul.f32 %v637, %v664
    %v667 = vtanh.pop %v660
    %669 = vrot.lane.b32.xlu0 %v667, 64
    %v670 = vpop.permute.xlu0 %669
    %v672 = vmul.f32 %v638, %v670
    %v673 = vsel %vm206, 1, 0
    %674 = vset.pattern.permute.xlu0 0
    %675 = vperm.xlu0 %674, %v673
    %v676 = vpop.permute.xlu0 %675
    %vm677 = vcmp.eq.s32.totalorder %v676, 1
    %v678 = vsel %vm677, %v666, %v527
    %v679 = vsel %vm677, %v649, %v528
    %v680 = vsel %vm209, 1, 0
    %681 = vset.pattern.permute.xlu0 0
    %682 = vperm.xlu0 %681, %v680
    %v683 = vpop.permute.xlu0 %682
    %vm684 = vcmp.eq.s32.totalorder %v683, 1
    %v685 = vsel %vm684, %v672, %v534
    %v686 = vsel %vm684, %v660, %v535
    %v687 = vsel %vm677, %v666, 0.0
    %v688 = vsel %vm684, %v672, 0.0
    %690 = vrot.lane.b32.xlu0 %v678, 32
    %v691 = vpop.permute.xlu0 %690
    %694 = vrot.lane.b32.xlu0 %v685, 64
    %v695 = vpop.permute.xlu0 %694
    %v697 = vsel %vm394, %v691, %v695
    %v699 = vsel %vm245, %v697, 0
    %701 = vmatprep.subr.mxu0 %v230
    %702 = vmatpush1.msra.mxu0 %v229
    %703 = vmatprep.subr.mxu0 %v232
    %704 = vmatpush1.msra.mxu0 %v231
    %705 = vmatprep.subr.mxu0 %v234
    %706 = vmatpush1.msra.mxu0 %v233
    %707 = vmatprep.subr.mxu0 %v236
    %708 = vmatpush1.msra.mxu0 %v235
    %709 = vmatprep.subr.mxu0 %v238
    %710 = vmatpush1.msra.mxu0 %v237
    %711 = vmatprep.subr.mxu0 %v240
    %712 = vmatpush1.msra.mxu0 %v239
    %713 = vmatprep.subr.mxu0 %v242
    %714 = vmatpush1.msra.mxu0 %v241
    %715 = vmatprep.subr.mxu0 %v244
    %716 = vmatpush1.msra.mxu0 %v243
    %717 = vmatprep.subr.mxu0 0.0
    %718 = vmatpush1.msra.mxu0 0.0
    %719 = vmatprep.subr.mxu0 0.0
    %720 = vmatpush1.msra.mxu0 0.0
    %721 = vmatprep.subr.mxu0 0.0
    %722 = vmatpush1.msra.mxu0 0.0
    %723 = vmatprep.subr.mxu0 0.0
    %724 = vmatpush1.msra.mxu0 0.0
    %725 = vmatprep.subr.mxu0 0.0
    %726 = vmatpush1.msra.mxu0 0.0
    %727 = vmatprep.subr.mxu0 0.0
    %728 = vmatpush1.msra.mxu0 0.0
    %729 = vmatprep.subr.mxu0 0.0
    %730 = vmatpush1.msra.mxu0 0.0
    %731 = vmatprep.subr.mxu0 0.0
    %732 = vmatpush1.msra.mxu0 0.0
    %733 = vmatprep.subr.mxu0 0.0
    %734 = vmatpush1.msra.mxu0 0.0
    %735 = vmatprep.subr.mxu0 0.0
    %736 = vmatpush1.msra.mxu0 0.0
    %737 = vmatprep.subr.mxu0 0.0
    %738 = vmatpush1.msra.mxu0 0.0
    %739 = vmatprep.subr.mxu0 0.0
    %740 = vmatpush1.msra.mxu0 0.0
    %741 = vmatprep.subr.mxu0 0.0
    %742 = vmatpush1.msra.mxu0 0.0
    %743 = vmatprep.subr.mxu0 0.0
    %744 = vmatpush1.msra.mxu0 0.0
    %745 = vmatprep.subr.mxu0 0.0
    %746 = vmatpush1.msra.mxu0 0.0
    %747 = vmatprep.subr.mxu0 0.0
    %748 = vmatpush1.msra.mxu0 0.0
    %749 = vmatprep.subr.mxu0 0.0
    %750 = vmatpush1.msra.mxu0 0.0
    %751 = vmatprep.subr.mxu0 0.0
    %752 = vmatpush1.msra.mxu0 0.0
    %753 = vmatprep.subr.mxu0 0.0
    %754 = vmatpush1.msra.mxu0 0.0
    %755 = vmatprep.subr.mxu0 0.0
    %756 = vmatpush1.msra.mxu0 0.0
    %757 = vmatprep.subr.mxu0 0.0
    %758 = vmatpush1.msra.mxu0 0.0
    %759 = vmatprep.subr.mxu0 0.0
    %760 = vmatpush1.msra.mxu0 0.0
    %761 = vmatprep.subr.mxu0 0.0
    %762 = vmatpush1.msra.mxu0 0.0
    %763 = vmatprep.subr.mxu0 0.0
    %764 = vmatpush1.msra.mxu0 0.0
    %765 = vmatprep.mubr.f32.mxu0 0.0
    %766 = vmatmul.mubr.f32.gmra.mrb[0].mxu0 %v699
    %v767 = vpop.f32.mrb[0].mxu0
    %v768 = vadd.f32 0.0, %v767
    %v769 = vpop.f32.mrb[0].mxu0
    %v770 = vadd.f32 0.0, %v769
    %771 = vdwg.mxu0
    %v772 = vadd.f32 %v176, %v768
    %v773 = vadd.f32 %v184, %v770
    %v774 = vtanh.pop %v772
    %v775 = vtanh.pop %v773
    %v776 = vxor.u32 %v772, 2147483648
    %v777 = vxor.u32 %v773, 2147483648
    %v778 = vmul.f32 %v776, 1.442695
    %v779 = vpow.pop %v778
    %v780 = vmul.f32 %v777, 1.442695
    %v781 = vpow.pop %v780
    %v782 = vadd.f32 %v779, 1.0
    %v783 = vadd.f32 %v781, 1.0
    %v784 = vrcp.pop %v782
    %v785 = vmul.f32 1.0, %v784
    %v786 = vrcp.pop %v783
    %v787 = vmul.f32 1.0, %v786
    %v788 = vsel %vm227, %v774, %v785
    %v789 = vsel %vm228, %v775, %v787
    %v790 = vmul.f32 %v788, %v679
    %792 = vrot.lane.b32.xlu0 %v788, 64
    %v793 = vpop.permute.xlu0 %792
    %v795 = vmul.f32 %v788, %v793
    %797 = vrot.lane.b32.xlu0 %v795, 32
    %v798 = vpop.permute.xlu0 %797
    %v800 = vadd.f32 %v790, %v798
    %v801 = vmul.f32 %v789, %v686
    %803 = vrot.lane.b32.xlu0 %v789, 64
    %v804 = vpop.permute.xlu0 %803
    %v806 = vmul.f32 %v789, %v804
    %808 = vrot.lane.b32.xlu0 %v806, 32
    %v809 = vpop.permute.xlu0 %808
    %v811 = vadd.f32 %v801, %v809
    %v812 = vtanh.pop %v800
    %814 = vrot.lane.b32.xlu0 %v812, 64
    %v815 = vpop.permute.xlu0 %814
    %v817 = vmul.f32 %v788, %v815
    %v818 = vtanh.pop %v811
    %820 = vrot.lane.b32.xlu0 %v818, 64
    %v821 = vpop.permute.xlu0 %820
    %v823 = vmul.f32 %v789, %v821
    %v824 = vsel %vm207, 1, 0
    %825 = vset.pattern.permute.xlu0 0
    %826 = vperm.xlu0 %825, %v824
    %v827 = vpop.permute.xlu0 %826
    %vm828 = vcmp.eq.s32.totalorder %v827, 1
    %v829 = vsel %vm828, %v817, %v678
    %v830 = vsel %vm828, %v800, %v679
    %v831 = vsel %vm208, 1, 0
    %832 = vset.pattern.permute.xlu0 0
    %833 = vperm.xlu0 %832, %v831
    %v834 = vpop.permute.xlu0 %833
    %vm835 = vcmp.eq.s32.totalorder %v834, 1
    %v836 = vsel %vm835, %v823, %v685
    %v837 = vsel %vm835, %v811, %v686
    %v838 = vsel %vm828, %v817, 0.0
    %v839 = vsel %vm835, %v823, 0.0
    %841 = vrot.lane.b32.xlu0 %v829, 32
    %v842 = vpop.permute.xlu0 %841
    %845 = vrot.lane.b32.xlu0 %v836, 64
    %v846 = vpop.permute.xlu0 %845
    %v848 = vsel %vm394, %v842, %v846
    %v850 = vsel %vm245, %v848, 0
    %852 = vmatprep.subr.mxu0 %v230
    %853 = vmatpush1.msra.mxu0 %v229
    %854 = vmatprep.subr.mxu0 %v232
    %855 = vmatpush1.msra.mxu0 %v231
    %856 = vmatprep.subr.mxu0 %v234
    %857 = vmatpush1.msra.mxu0 %v233
    %858 = vmatprep.subr.mxu0 %v236
    %859 = vmatpush1.msra.mxu0 %v235
    %860 = vmatprep.subr.mxu0 %v238
    %861 = vmatpush1.msra.mxu0 %v237
    %862 = vmatprep.subr.mxu0 %v240
    %863 = vmatpush1.msra.mxu0 %v239
    %864 = vmatprep.subr.mxu0 %v242
    %865 = vmatpush1.msra.mxu0 %v241
    %866 = vmatprep.subr.mxu0 %v244
    %867 = vmatpush1.msra.mxu0 %v243
    %868 = vmatprep.subr.mxu0 0.0
    %869 = vmatpush1.msra.mxu0 0.0
    %870 = vmatprep.subr.mxu0 0.0
    %871 = vmatpush1.msra.mxu0 0.0
    %872 = vmatprep.subr.mxu0 0.0
    %873 = vmatpush1.msra.mxu0 0.0
    %874 = vmatprep.subr.mxu0 0.0
    %875 = vmatpush1.msra.mxu0 0.0
    %876 = vmatprep.subr.mxu0 0.0
    %877 = vmatpush1.msra.mxu0 0.0
    %878 = vmatprep.subr.mxu0 0.0
    %879 = vmatpush1.msra.mxu0 0.0
    %880 = vmatprep.subr.mxu0 0.0
    %881 = vmatpush1.msra.mxu0 0.0
    %882 = vmatprep.subr.mxu0 0.0
    %883 = vmatpush1.msra.mxu0 0.0
    %884 = vmatprep.subr.mxu0 0.0
    %885 = vmatpush1.msra.mxu0 0.0
    %886 = vmatprep.subr.mxu0 0.0
    %887 = vmatpush1.msra.mxu0 0.0
    %888 = vmatprep.subr.mxu0 0.0
    %889 = vmatpush1.msra.mxu0 0.0
    %890 = vmatprep.subr.mxu0 0.0
    %891 = vmatpush1.msra.mxu0 0.0
    %892 = vmatprep.subr.mxu0 0.0
    %893 = vmatpush1.msra.mxu0 0.0
    %894 = vmatprep.subr.mxu0 0.0
    %895 = vmatpush1.msra.mxu0 0.0
    %896 = vmatprep.subr.mxu0 0.0
    %897 = vmatpush1.msra.mxu0 0.0
    %898 = vmatprep.subr.mxu0 0.0
    %899 = vmatpush1.msra.mxu0 0.0
    %900 = vmatprep.subr.mxu0 0.0
    %901 = vmatpush1.msra.mxu0 0.0
    %902 = vmatprep.subr.mxu0 0.0
    %903 = vmatpush1.msra.mxu0 0.0
    %904 = vmatprep.subr.mxu0 0.0
    %905 = vmatpush1.msra.mxu0 0.0
    %906 = vmatprep.subr.mxu0 0.0
    %907 = vmatpush1.msra.mxu0 0.0
    %908 = vmatprep.subr.mxu0 0.0
    %909 = vmatpush1.msra.mxu0 0.0
    %910 = vmatprep.subr.mxu0 0.0
    %911 = vmatpush1.msra.mxu0 0.0
    %912 = vmatprep.subr.mxu0 0.0
    %913 = vmatpush1.msra.mxu0 0.0
    %914 = vmatprep.subr.mxu0 0.0
    %915 = vmatpush1.msra.mxu0 0.0
    %916 = vmatprep.mubr.f32.mxu0 0.0
    %917 = vmatmul.mubr.f32.gmra.mrb[0].mxu0 %v850
    %v918 = vpop.f32.mrb[0].mxu0
    %v919 = vadd.f32 0.0, %v918
    %v920 = vpop.f32.mrb[0].mxu0
    %v921 = vadd.f32 0.0, %v920
    %922 = vdwg.mxu0
    %v923 = vadd.f32 %v182, %v919
    %v924 = vadd.f32 %v178, %v921
    %v925 = vtanh.pop %v923
    %v926 = vtanh.pop %v924
    %v927 = vxor.u32 %v923, 2147483648
    %v928 = vxor.u32 %v924, 2147483648
    %v929 = vmul.f32 %v927, 1.442695
    %v930 = vpow.pop %v929
    %v931 = vmul.f32 %v928, 1.442695
    %v932 = vpow.pop %v931
    %v933 = vadd.f32 %v930, 1.0
    %v934 = vadd.f32 %v932, 1.0
    %v935 = vrcp.pop %v933
    %v936 = vmul.f32 1.0, %v935
    %v937 = vrcp.pop %v934
    %v938 = vmul.f32 1.0, %v937
    %v939 = vsel %vm227, %v925, %v936
    %v940 = vsel %vm228, %v926, %v938
    %v941 = vmul.f32 %v939, %v830
    %943 = vrot.lane.b32.xlu0 %v939, 64
    %v944 = vpop.permute.xlu0 %943
    %v946 = vmul.f32 %v939, %v944
    %948 = vrot.lane.b32.xlu0 %v946, 32
    %v949 = vpop.permute.xlu0 %948
    %v951 = vadd.f32 %v941, %v949
    %v952 = vmul.f32 %v940, %v837
    %954 = vrot.lane.b32.xlu0 %v940, 64
    %v955 = vpop.permute.xlu0 %954
    %v957 = vmul.f32 %v940, %v955
    %959 = vrot.lane.b32.xlu0 %v957, 32
    %v960 = vpop.permute.xlu0 %959
    %v962 = vadd.f32 %v952, %v960
    %v963 = vtanh.pop %v951
    %965 = vrot.lane.b32.xlu0 %v963, 64
    %v966 = vpop.permute.xlu0 %965
    %v968 = vmul.f32 %v939, %v966
    %v969 = vtanh.pop %v962
    %971 = vrot.lane.b32.xlu0 %v969, 64
    %v972 = vpop.permute.xlu0 %971
    %v974 = vmul.f32 %v940, %v972
    %v975 = vsel %vm835, %v968, %v829
    %v976 = vsel %vm835, %v951, %v830
    %v977 = vsel %vm828, %v974, %v836
    %v978 = vsel %vm828, %v962, %v837
    %v979 = vsel %vm835, %v968, 0.0
    %v980 = vsel %vm828, %v974, 0.0
    %982 = vrot.lane.b32.xlu0 %v975, 32
    %v983 = vpop.permute.xlu0 %982
    %986 = vrot.lane.b32.xlu0 %v977, 64
    %v987 = vpop.permute.xlu0 %986
    %v989 = vsel %vm394, %v983, %v987
    %v991 = vsel %vm245, %v989, 0
    %993 = vmatprep.subr.mxu0 %v230
    %994 = vmatpush1.msra.mxu0 %v229
    %995 = vmatprep.subr.mxu0 %v232
    %996 = vmatpush1.msra.mxu0 %v231
    %997 = vmatprep.subr.mxu0 %v234
    %998 = vmatpush1.msra.mxu0 %v233
    %999 = vmatprep.subr.mxu0 %v236
    %1000 = vmatpush1.msra.mxu0 %v235
    %1001 = vmatprep.subr.mxu0 %v238
    %1002 = vmatpush1.msra.mxu0 %v237
    %1003 = vmatprep.subr.mxu0 %v240
    %1004 = vmatpush1.msra.mxu0 %v239
    %1005 = vmatprep.subr.mxu0 %v242
    %1006 = vmatpush1.msra.mxu0 %v241
    %1007 = vmatprep.subr.mxu0 %v244
    %1008 = vmatpush1.msra.mxu0 %v243
    %1009 = vmatprep.subr.mxu0 0.0
    %1010 = vmatpush1.msra.mxu0 0.0
    %1011 = vmatprep.subr.mxu0 0.0
    %1012 = vmatpush1.msra.mxu0 0.0
    %1013 = vmatprep.subr.mxu0 0.0
    %1014 = vmatpush1.msra.mxu0 0.0
    %1015 = vmatprep.subr.mxu0 0.0
    %1016 = vmatpush1.msra.mxu0 0.0
    %1017 = vmatprep.subr.mxu0 0.0
    %1018 = vmatpush1.msra.mxu0 0.0
    %1019 = vmatprep.subr.mxu0 0.0
    %1020 = vmatpush1.msra.mxu0 0.0
    %1021 = vmatprep.subr.mxu0 0.0
    %1022 = vmatpush1.msra.mxu0 0.0
    %1023 = vmatprep.subr.mxu0 0.0
    %1024 = vmatpush1.msra.mxu0 0.0
    %1025 = vmatprep.subr.mxu0 0.0
    %1026 = vmatpush1.msra.mxu0 0.0
    %1027 = vmatprep.subr.mxu0 0.0
    %1028 = vmatpush1.msra.mxu0 0.0
    %1029 = vmatprep.subr.mxu0 0.0
    %1030 = vmatpush1.msra.mxu0 0.0
    %1031 = vmatprep.subr.mxu0 0.0
    %1032 = vmatpush1.msra.mxu0 0.0
    %1033 = vmatprep.subr.mxu0 0.0
    %1034 = vmatpush1.msra.mxu0 0.0
    %1035 = vmatprep.subr.mxu0 0.0
    %1036 = vmatpush1.msra.mxu0 0.0
    %1037 = vmatprep.subr.mxu0 0.0
    %1038 = vmatpush1.msra.mxu0 0.0
    %1039 = vmatprep.subr.mxu0 0.0
    %1040 = vmatpush1.msra.mxu0 0.0
    %1041 = vmatprep.subr.mxu0 0.0
    %1042 = vmatpush1.msra.mxu0 0.0
    %1043 = vmatprep.subr.mxu0 0.0
    %1044 = vmatpush1.msra.mxu0 0.0
    %1045 = vmatprep.subr.mxu0 0.0
    %1046 = vmatpush1.msra.mxu0 0.0
    %1047 = vmatprep.subr.mxu0 0.0
    %1048 = vmatpush1.msra.mxu0 0.0
    %1049 = vmatprep.subr.mxu0 0.0
    %1050 = vmatpush1.msra.mxu0 0.0
    %1051 = vmatprep.subr.mxu0 0.0
    %1052 = vmatpush1.msra.mxu0 0.0
    %1053 = vmatprep.subr.mxu0 0.0
    %1054 = vmatpush1.msra.mxu0 0.0
    %1055 = vmatprep.subr.mxu0 0.0
    %1056 = vmatpush1.msra.mxu0 0.0
    %1057 = vmatprep.mubr.f32.mxu0 0.0
    %1058 = vmatmul.mubr.f32.gmra.mrb[0].mxu0 %v991
    %v1059 = vpop.f32.mrb[0].mxu0
    %v1060 = vadd.f32 0.0, %v1059
    %v1061 = vpop.f32.mrb[0].mxu0
    %v1062 = vadd.f32 0.0, %v1061
    %1063 = vdwg.mxu0
    %v1064 = vadd.f32 %v188, %v1060
    %v1065 = vadd.f32 %v172, %v1062
    %v1066 = vtanh.pop %v1064
    %v1067 = vtanh.pop %v1065
    %v1068 = vxor.u32 %v1064, 2147483648
    %v1069 = vxor.u32 %v1065, 2147483648
    %v1070 = vmul.f32 %v1068, 1.442695
    %v1071 = vpow.pop %v1070
    %v1072 = vmul.f32 %v1069, 1.442695
    %v1073 = vpow.pop %v1072
    %v1074 = vadd.f32 %v1071, 1.0
    %v1075 = vadd.f32 %v1073, 1.0
    %v1076 = vrcp.pop %v1074
    %v1077 = vmul.f32 1.0, %v1076
    %v1078 = vrcp.pop %v1075
    %v1079 = vmul.f32 1.0, %v1078
    %v1080 = vsel %vm227, %v1066, %v1077
    %v1081 = vsel %vm228, %v1067, %v1079
    %v1082 = vmul.f32 %v1080, %v976
    %1084 = vrot.lane.b32.xlu0 %v1080, 64
    %v1085 = vpop.permute.xlu0 %1084
    %v1087 = vmul.f32 %v1080, %v1085
    %1089 = vrot.lane.b32.xlu0 %v1087, 32
    %v1090 = vpop.permute.xlu0 %1089
    %v1092 = vadd.f32 %v1082, %v1090
    %v1093 = vmul.f32 %v1081, %v978
    %1095 = vrot.lane.b32.xlu0 %v1081, 64
    %v1096 = vpop.permute.xlu0 %1095
    %v1098 = vmul.f32 %v1081, %v1096
    %1100 = vrot.lane.b32.xlu0 %v1098, 32
    %v1101 = vpop.permute.xlu0 %1100
    %v1103 = vadd.f32 %v1093, %v1101
    %v1104 = vtanh.pop %v1092
    %1106 = vrot.lane.b32.xlu0 %v1104, 64
    %v1107 = vpop.permute.xlu0 %1106
    %v1109 = vmul.f32 %v1080, %v1107
    %v1110 = vtanh.pop %v1103
    %1112 = vrot.lane.b32.xlu0 %v1110, 64
    %v1113 = vpop.permute.xlu0 %1112
    %v1115 = vmul.f32 %v1081, %v1113
    %v1116 = vsel %vm684, %v1109, %v975
    %v1117 = vsel %vm684, %v1092, %v976
    %v1118 = vsel %vm677, %v1115, %v977
    %v1119 = vsel %vm677, %v1103, %v978
    %v1120 = vsel %vm684, %v1109, 0.0
    %v1121 = vsel %vm677, %v1115, 0.0
    %1123 = vrot.lane.b32.xlu0 %v1116, 32
    %v1124 = vpop.permute.xlu0 %1123
    %1127 = vrot.lane.b32.xlu0 %v1118, 64
    %v1128 = vpop.permute.xlu0 %1127
    %v1130 = vsel %vm394, %v1124, %v1128
    %v1132 = vsel %vm245, %v1130, 0
    %1134 = vmatprep.subr.mxu0 %v230
    %1135 = vmatpush1.msra.mxu0 %v229
    %1136 = vmatprep.subr.mxu0 %v232
    %1137 = vmatpush1.msra.mxu0 %v231
    %1138 = vmatprep.subr.mxu0 %v234
    %1139 = vmatpush1.msra.mxu0 %v233
    %1140 = vmatprep.subr.mxu0 %v236
    %1141 = vmatpush1.msra.mxu0 %v235
    %1142 = vmatprep.subr.mxu0 %v238
    %1143 = vmatpush1.msra.mxu0 %v237
    %1144 = vmatprep.subr.mxu0 %v240
    %1145 = vmatpush1.msra.mxu0 %v239
    %1146 = vmatprep.subr.mxu0 %v242
    %1147 = vmatpush1.msra.mxu0 %v241
    %1148 = vmatprep.subr.mxu0 %v244
    %1149 = vmatpush1.msra.mxu0 %v243
    %1150 = vmatprep.subr.mxu0 0.0
    %1151 = vmatpush1.msra.mxu0 0.0
    %1152 = vmatprep.subr.mxu0 0.0
    %1153 = vmatpush1.msra.mxu0 0.0
    %1154 = vmatprep.subr.mxu0 0.0
    %1155 = vmatpush1.msra.mxu0 0.0
    %1156 = vmatprep.subr.mxu0 0.0
    %1157 = vmatpush1.msra.mxu0 0.0
    %1158 = vmatprep.subr.mxu0 0.0
    %1159 = vmatpush1.msra.mxu0 0.0
    %1160 = vmatprep.subr.mxu0 0.0
    %1161 = vmatpush1.msra.mxu0 0.0
    %1162 = vmatprep.subr.mxu0 0.0
    %1163 = vmatpush1.msra.mxu0 0.0
    %1164 = vmatprep.subr.mxu0 0.0
    %1165 = vmatpush1.msra.mxu0 0.0
    %1166 = vmatprep.subr.mxu0 0.0
    %1167 = vmatpush1.msra.mxu0 0.0
    %1168 = vmatprep.subr.mxu0 0.0
    %1169 = vmatpush1.msra.mxu0 0.0
    %1170 = vmatprep.subr.mxu0 0.0
    %1171 = vmatpush1.msra.mxu0 0.0
    %1172 = vmatprep.subr.mxu0 0.0
    %1173 = vmatpush1.msra.mxu0 0.0
    %1174 = vmatprep.subr.mxu0 0.0
    %1175 = vmatpush1.msra.mxu0 0.0
    %1176 = vmatprep.subr.mxu0 0.0
    %1177 = vmatpush1.msra.mxu0 0.0
    %1178 = vmatprep.subr.mxu0 0.0
    %1179 = vmatpush1.msra.mxu0 0.0
    %1180 = vmatprep.subr.mxu0 0.0
    %1181 = vmatpush1.msra.mxu0 0.0
    %1182 = vmatprep.subr.mxu0 0.0
    %1183 = vmatpush1.msra.mxu0 0.0
    %1184 = vmatprep.subr.mxu0 0.0
    %1185 = vmatpush1.msra.mxu0 0.0
    %1186 = vmatprep.subr.mxu0 0.0
    %1187 = vmatpush1.msra.mxu0 0.0
    %1188 = vmatprep.subr.mxu0 0.0
    %1189 = vmatpush1.msra.mxu0 0.0
    %1190 = vmatprep.subr.mxu0 0.0
    %1191 = vmatpush1.msra.mxu0 0.0
    %1192 = vmatprep.subr.mxu0 0.0
    %1193 = vmatpush1.msra.mxu0 0.0
    %1194 = vmatprep.subr.mxu0 0.0
    %1195 = vmatpush1.msra.mxu0 0.0
    %1196 = vmatprep.subr.mxu0 0.0
    %1197 = vmatpush1.msra.mxu0 0.0
    %1198 = vmatprep.mubr.f32.mxu0 0.0
    %1199 = vmatmul.mubr.f32.gmra.mrb[0].mxu0 %v1132
    %v1200 = vpop.f32.mrb[0].mxu0
    %v1201 = vadd.f32 0.0, %v1200
    %v1202 = vpop.f32.mrb[0].mxu0
    %v1203 = vadd.f32 0.0, %v1202
    %1204 = vdwg.mxu0
    %v1205 = vadd.f32 %v194, %v1201
    %v1206 = vadd.f32 %v166, %v1203
    %v1207 = vtanh.pop %v1205
    %v1208 = vtanh.pop %v1206
    %v1209 = vxor.u32 %v1205, 2147483648
    %v1210 = vxor.u32 %v1206, 2147483648
    %v1211 = vmul.f32 %v1209, 1.442695
    %v1212 = vpow.pop %v1211
    %v1213 = vmul.f32 %v1210, 1.442695
    %v1214 = vpow.pop %v1213
    %v1215 = vadd.f32 %v1212, 1.0
    %v1216 = vadd.f32 %v1214, 1.0
    %v1217 = vrcp.pop %v1215
    %v1218 = vmul.f32 1.0, %v1217
    %v1219 = vrcp.pop %v1216
    %v1220 = vmul.f32 1.0, %v1219
    %v1221 = vsel %vm227, %v1207, %v1218
    %v1222 = vsel %vm228, %v1208, %v1220
    %v1223 = vmul.f32 %v1221, %v1117
    %1225 = vrot.lane.b32.xlu0 %v1221, 64
    %v1226 = vpop.permute.xlu0 %1225
    %v1228 = vmul.f32 %v1221, %v1226
    %1230 = vrot.lane.b32.xlu0 %v1228, 32
    %v1231 = vpop.permute.xlu0 %1230
    %v1233 = vadd.f32 %v1223, %v1231
    %v1234 = vmul.f32 %v1222, %v1119
    %1236 = vrot.lane.b32.xlu0 %v1222, 64
    %v1237 = vpop.permute.xlu0 %1236
    %v1239 = vmul.f32 %v1222, %v1237
    %1241 = vrot.lane.b32.xlu0 %v1239, 32
    %v1242 = vpop.permute.xlu0 %1241
    %v1244 = vadd.f32 %v1234, %v1242
    %v1245 = vtanh.pop %v1233
    %1247 = vrot.lane.b32.xlu0 %v1245, 64
    %v1248 = vpop.permute.xlu0 %1247
    %v1250 = vmul.f32 %v1221, %v1248
    %v1251 = vtanh.pop %v1244
    %1253 = vrot.lane.b32.xlu0 %v1251, 64
    %v1254 = vpop.permute.xlu0 %1253
    %v1256 = vmul.f32 %v1222, %v1254
    %v1257 = vsel %vm533, %v1250, %v1116
    %v1258 = vsel %vm533, %v1233, %v1117
    %v1259 = vsel %vm526, %v1256, %v1118
    %v1260 = vsel %vm526, %v1244, %v1119
    %v1261 = vsel %vm533, %v1250, 0.0
    %v1262 = vsel %vm526, %v1256, 0.0
    %1264 = vrot.lane.b32.xlu0 %v1257, 32
    %v1265 = vpop.permute.xlu0 %1264
    %1268 = vrot.lane.b32.xlu0 %v1259, 64
    %v1269 = vpop.permute.xlu0 %1268
    %v1271 = vsel %vm394, %v1265, %v1269
    %v1273 = vsel %vm245, %v1271, 0
    %1275 = vmatprep.subr.mxu0 %v230
    %1276 = vmatpush1.msra.mxu0 %v229
    %1277 = vmatprep.subr.mxu0 %v232
    %1278 = vmatpush1.msra.mxu0 %v231
    %1279 = vmatprep.subr.mxu0 %v234
    %1280 = vmatpush1.msra.mxu0 %v233
    %1281 = vmatprep.subr.mxu0 %v236
    %1282 = vmatpush1.msra.mxu0 %v235
    %1283 = vmatprep.subr.mxu0 %v238
    %1284 = vmatpush1.msra.mxu0 %v237
    %1285 = vmatprep.subr.mxu0 %v240
    %1286 = vmatpush1.msra.mxu0 %v239
    %1287 = vmatprep.subr.mxu0 %v242
    %1288 = vmatpush1.msra.mxu0 %v241
    %1289 = vmatprep.subr.mxu0 %v244
    %1290 = vmatpush1.msra.mxu0 %v243
    %1291 = vmatprep.subr.mxu0 0.0
    %1292 = vmatpush1.msra.mxu0 0.0
    %1293 = vmatprep.subr.mxu0 0.0
    %1294 = vmatpush1.msra.mxu0 0.0
    %1295 = vmatprep.subr.mxu0 0.0
    %1296 = vmatpush1.msra.mxu0 0.0
    %1297 = vmatprep.subr.mxu0 0.0
    %1298 = vmatpush1.msra.mxu0 0.0
    %1299 = vmatprep.subr.mxu0 0.0
    %1300 = vmatpush1.msra.mxu0 0.0
    %1301 = vmatprep.subr.mxu0 0.0
    %1302 = vmatpush1.msra.mxu0 0.0
    %1303 = vmatprep.subr.mxu0 0.0
    %1304 = vmatpush1.msra.mxu0 0.0
    %1305 = vmatprep.subr.mxu0 0.0
    %1306 = vmatpush1.msra.mxu0 0.0
    %1307 = vmatprep.subr.mxu0 0.0
    %1308 = vmatpush1.msra.mxu0 0.0
    %1309 = vmatprep.subr.mxu0 0.0
    %1310 = vmatpush1.msra.mxu0 0.0
    %1311 = vmatprep.subr.mxu0 0.0
    %1312 = vmatpush1.msra.mxu0 0.0
    %1313 = vmatprep.subr.mxu0 0.0
    %1314 = vmatpush1.msra.mxu0 0.0
    %1315 = vmatprep.subr.mxu0 0.0
    %1316 = vmatpush1.msra.mxu0 0.0
    %1317 = vmatprep.subr.mxu0 0.0
    %1318 = vmatpush1.msra.mxu0 0.0
    %1319 = vmatprep.subr.mxu0 0.0
    %1320 = vmatpush1.msra.mxu0 0.0
    %1321 = vmatprep.subr.mxu0 0.0
    %1322 = vmatpush1.msra.mxu0 0.0
    %1323 = vmatprep.subr.mxu0 0.0
    %1324 = vmatpush1.msra.mxu0 0.0
    %1325 = vmatprep.subr.mxu0 0.0
    %1326 = vmatpush1.msra.mxu0 0.0
    %1327 = vmatprep.subr.mxu0 0.0
    %1328 = vmatpush1.msra.mxu0 0.0
    %1329 = vmatprep.subr.mxu0 0.0
    %1330 = vmatpush1.msra.mxu0 0.0
    %1331 = vmatprep.subr.mxu0 0.0
    %1332 = vmatpush1.msra.mxu0 0.0
    %1333 = vmatprep.subr.mxu0 0.0
    %1334 = vmatpush1.msra.mxu0 0.0
    %1335 = vmatprep.subr.mxu0 0.0
    %1336 = vmatpush1.msra.mxu0 0.0
    %1337 = vmatprep.subr.mxu0 0.0
    %1338 = vmatpush1.msra.mxu0 0.0
    %1339 = vmatprep.mubr.f32.mxu0 0.0
    %1340 = vmatmul.mubr.f32.gmra.mrb[0].mxu0 %v1273
    %v1341 = vpop.f32.mrb[0].mxu0
    %v1342 = vadd.f32 0.0, %v1341
    %v1343 = vpop.f32.mrb[0].mxu0
    %v1344 = vadd.f32 0.0, %v1343
    %1345 = vdwg.mxu0
    %v1346 = vadd.f32 %v200, %v1342
    %v1347 = vadd.f32 %v160, %v1344
    %v1348 = vtanh.pop %v1346
    %v1349 = vtanh.pop %v1347
    %v1350 = vxor.u32 %v1346, 2147483648
    %v1351 = vxor.u32 %v1347, 2147483648
    %v1352 = vmul.f32 %v1350, 1.442695
    %v1353 = vpow.pop %v1352
    %v1354 = vmul.f32 %v1351, 1.442695
    %v1355 = vpow.pop %v1354
    %v1356 = vadd.f32 %v1353, 1.0
    %v1357 = vadd.f32 %v1355, 1.0
    %v1358 = vrcp.pop %v1356
    %v1359 = vmul.f32 1.0, %v1358
    %v1360 = vrcp.pop %v1357
    %v1361 = vmul.f32 1.0, %v1360
    %v1362 = vsel %vm227, %v1348, %v1359
    %v1363 = vsel %vm228, %v1349, %v1361
    %v1364 = vmul.f32 %v1362, %v1258
    %1366 = vrot.lane.b32.xlu0 %v1362, 64
    %v1367 = vpop.permute.xlu0 %1366
    %v1369 = vmul.f32 %v1362, %v1367
    %1371 = vrot.lane.b32.xlu0 %v1369, 32
    %v1372 = vpop.permute.xlu0 %1371
    %v1374 = vadd.f32 %v1364, %v1372
    %v1375 = vmul.f32 %v1363, %v1260
    %1377 = vrot.lane.b32.xlu0 %v1363, 64
    %v1378 = vpop.permute.xlu0 %1377
    %v1380 = vmul.f32 %v1363, %v1378
    %1382 = vrot.lane.b32.xlu0 %v1380, 32
    %v1383 = vpop.permute.xlu0 %1382
    %v1385 = vadd.f32 %v1375, %v1383
    %v1386 = vtanh.pop %v1374
    %1388 = vrot.lane.b32.xlu0 %v1386, 64
    %v1389 = vpop.permute.xlu0 %1388
    %v1391 = vmul.f32 %v1362, %v1389
    %v1392 = vtanh.pop %v1385
    %1394 = vrot.lane.b32.xlu0 %v1392, 64
    %v1395 = vpop.permute.xlu0 %1394
    %v1397 = vmul.f32 %v1363, %v1395
    %v1398 = vsel %vm383, %v1391, 0.0
    %v1399 = vsel %vm376, %v1397, 0.0
    %1401 = vrot.lane.b32.xlu0 %v1399, 64
    %v1402 = vpop.permute.xlu0 %1401
    %v1404 = vsel %vm394, %v388, %v1402
    %1406 = vrot.lane.b32.xlu0 %v536, 32
    %v1407 = vpop.permute.xlu0 %1406
    %1410 = vrot.lane.b32.xlu0 %v1262, 64
    %v1411 = vpop.permute.xlu0 %1410
    %v1413 = vsel %vm394, %v1407, %v1411
    %1415 = vrot.lane.b32.xlu0 %v687, 32
    %v1416 = vpop.permute.xlu0 %1415
    %1419 = vrot.lane.b32.xlu0 %v1121, 64
    %v1420 = vpop.permute.xlu0 %1419
    %v1422 = vsel %vm394, %v1416, %v1420
    %1424 = vrot.lane.b32.xlu0 %v838, 32
    %v1425 = vpop.permute.xlu0 %1424
    %1428 = vrot.lane.b32.xlu0 %v980, 64
    %v1429 = vpop.permute.xlu0 %1428
    %v1431 = vsel %vm394, %v1425, %v1429
    %1433 = vrot.lane.b32.xlu0 %v979, 32
    %v1434 = vpop.permute.xlu0 %1433
    %1437 = vrot.lane.b32.xlu0 %v839, 64
    %v1438 = vpop.permute.xlu0 %1437
    %v1440 = vsel %vm394, %v1434, %v1438
    %1442 = vrot.lane.b32.xlu0 %v1120, 32
    %v1443 = vpop.permute.xlu0 %1442
    %1446 = vrot.lane.b32.xlu0 %v688, 64
    %v1447 = vpop.permute.xlu0 %1446
    %v1449 = vsel %vm394, %v1443, %v1447
    %1451 = vrot.lane.b32.xlu0 %v1261, 32
    %v1452 = vpop.permute.xlu0 %1451
    %1455 = vrot.lane.b32.xlu0 %v537, 64
    %v1456 = vpop.permute.xlu0 %1455
    %v1458 = vsel %vm394, %v1452, %v1456
    %1460 = vrot.lane.b32.xlu0 %v1398, 32
    %v1461 = vpop.permute.xlu0 %1460
    %v1463 = vsel %vm394, %v1461, %v392
    %v1464 = vld [vmem:[%s5] sm:$0xff]
    %v1465 = vld [vmem:[%s5 + $0x8] sm:$0xff]
    %v1466 = vld [vmem:[%s5 + $0x10] sm:$0xff]
    %v1467 = vld [vmem:[%s5 + $0x18] sm:$0xff]
    %v1468 = vld [vmem:[%s5 + $0x20] sm:$0xff]
    %v1469 = vld [vmem:[%s5 + $0x28] sm:$0xff]
    %v1470 = vld [vmem:[%s5 + $0x30] sm:$0xff]
    %v1471 = vld [vmem:[%s5 + $0x38] sm:$0xff]
    %v1472 = vld [vmem:[%s6] sm:$0x1]
    %v1474 = vlaneseq
    %v1475 = vshrl.u32 %v1474, 7
    %v1476 = vsub.s32 0, %v1475
    %v1477 = vrot.slane %v1472, %v1476
    %v1480 = vsel %vm245, %v1404, 0
    %v1483 = vsel %vm245, %v1413, 0
    %v1486 = vsel %vm245, %v1422, 0
    %v1489 = vsel %vm245, %v1431, 0
    %v1492 = vsel %vm245, %v1440, 0
    %v1495 = vsel %vm245, %v1449, 0
    %v1498 = vsel %vm245, %v1458, 0
    %v1501 = vsel %vm245, %v1463, 0
    %1503 = vmatprep.subr.mxu0 0.0
    %1504 = vmatpush1.msra.mxu0 %v1464
    %1505 = vmatprep.subr.mxu0 0.0
    %1506 = vmatpush1.msra.mxu0 %v1465
    %1507 = vmatprep.subr.mxu0 0.0
    %1508 = vmatpush1.msra.mxu0 %v1466
    %1509 = vmatprep.subr.mxu0 0.0
    %1510 = vmatpush1.msra.mxu0 %v1467
    %1511 = vmatprep.subr.mxu0 0.0
    %1512 = vmatpush1.msra.mxu0 %v1468
    %1513 = vmatprep.subr.mxu0 0.0
    %1514 = vmatpush1.msra.mxu0 %v1469
    %1515 = vmatprep.subr.mxu0 0.0
    %1516 = vmatpush1.msra.mxu0 %v1470
    %1517 = vmatprep.subr.mxu0 0.0
    %1518 = vmatpush1.msra.mxu0 %v1471
    %1519 = vmatprep.subr.mxu0 0.0
    %1520 = vmatpush1.msra.mxu0 0.0
    %1521 = vmatprep.subr.mxu0 0.0
    %1522 = vmatpush1.msra.mxu0 0.0
    %1523 = vmatprep.subr.mxu0 0.0
    %1524 = vmatpush1.msra.mxu0 0.0
    %1525 = vmatprep.subr.mxu0 0.0
    %1526 = vmatpush1.msra.mxu0 0.0
    %1527 = vmatprep.subr.mxu0 0.0
    %1528 = vmatpush1.msra.mxu0 0.0
    %1529 = vmatprep.subr.mxu0 0.0
    %1530 = vmatpush1.msra.mxu0 0.0
    %1531 = vmatprep.subr.mxu0 0.0
    %1532 = vmatpush1.msra.mxu0 0.0
    %1533 = vmatprep.subr.mxu0 0.0
    %1534 = vmatpush1.msra.mxu0 0.0
    %1535 = vmatprep.subr.mxu0 0.0
    %1536 = vmatpush1.msra.mxu0 0.0
    %1537 = vmatprep.subr.mxu0 0.0
    %1538 = vmatpush1.msra.mxu0 0.0
    %1539 = vmatprep.subr.mxu0 0.0
    %1540 = vmatpush1.msra.mxu0 0.0
    %1541 = vmatprep.subr.mxu0 0.0
    %1542 = vmatpush1.msra.mxu0 0.0
    %1543 = vmatprep.subr.mxu0 0.0
    %1544 = vmatpush1.msra.mxu0 0.0
    %1545 = vmatprep.subr.mxu0 0.0
    %1546 = vmatpush1.msra.mxu0 0.0
    %1547 = vmatprep.subr.mxu0 0.0
    %1548 = vmatpush1.msra.mxu0 0.0
    %1549 = vmatprep.subr.mxu0 0.0
    %1550 = vmatpush1.msra.mxu0 0.0
    %1551 = vmatprep.subr.mxu0 0.0
    %1552 = vmatpush1.msra.mxu0 0.0
    %1553 = vmatprep.subr.mxu0 0.0
    %1554 = vmatpush1.msra.mxu0 0.0
    %1555 = vmatprep.subr.mxu0 0.0
    %1556 = vmatpush1.msra.mxu0 0.0
    %1557 = vmatprep.subr.mxu0 0.0
    %1558 = vmatpush1.msra.mxu0 0.0
    %1559 = vmatprep.subr.mxu0 0.0
    %1560 = vmatpush1.msra.mxu0 0.0
    %1561 = vmatprep.subr.mxu0 0.0
    %1562 = vmatpush1.msra.mxu0 0.0
    %1563 = vmatprep.subr.mxu0 0.0
    %1564 = vmatpush1.msra.mxu0 0.0
    %1565 = vmatprep.subr.mxu0 0.0
    %1566 = vmatpush1.msra.mxu0 0.0
    %1567 = vmatprep.mubr.f32.mxu0 0.0
    %1568 = vmatmul.mubr.f32.gmra.mrb[0].mxu0 %v1480
    %v1569 = vpop.f32.mrb[0].mxu0
    %v1570 = vadd.f32 %v1477, %v1569
    %v1571 = vpop.f32.mrb[0].mxu0
    %1572 = vmatprep.mubr.f32.mxu0 0.0
    %1573 = vmatmul.mubr.f32.gmra.mrb[0].mxu0 %v1483
    %v1574 = vpop.f32.mrb[0].mxu0
    %v1575 = vadd.f32 %v1477, %v1574
    %v1576 = vpop.f32.mrb[0].mxu0
    %1577 = vmatprep.mubr.f32.mxu0 0.0
    %1578 = vmatmul.mubr.f32.gmra.mrb[0].mxu0 %v1486
    %v1579 = vpop.f32.mrb[0].mxu0
    %v1580 = vadd.f32 %v1477, %v1579
    %v1581 = vpop.f32.mrb[0].mxu0
    %1582 = vmatprep.mubr.f32.mxu0 0.0
    %1583 = vmatmul.mubr.f32.gmra.mrb[0].mxu0 %v1489
    %v1584 = vpop.f32.mrb[0].mxu0
    %v1585 = vadd.f32 %v1477, %v1584
    %v1586 = vpop.f32.mrb[0].mxu0
    %1587 = vmatprep.mubr.f32.mxu0 0.0
    %1588 = vmatmul.mubr.f32.gmra.mrb[0].mxu0 %v1492
    %v1589 = vpop.f32.mrb[0].mxu0
    %v1590 = vadd.f32 %v1477, %v1589
    %v1591 = vpop.f32.mrb[0].mxu0
    %1592 = vmatprep.mubr.f32.mxu0 0.0
    %1593 = vmatmul.mubr.f32.gmra.mrb[0].mxu0 %v1495
    %v1594 = vpop.f32.mrb[0].mxu0
    %v1595 = vadd.f32 %v1477, %v1594
    %v1596 = vpop.f32.mrb[0].mxu0
    %1597 = vmatprep.mubr.f32.mxu0 0.0
    %1598 = vmatmul.mubr.f32.gmra.mrb[0].mxu0 %v1498
    %v1599 = vpop.f32.mrb[0].mxu0
    %v1600 = vadd.f32 %v1477, %v1599
    %v1601 = vpop.f32.mrb[0].mxu0
    %1602 = vmatprep.mubr.f32.mxu0 0.0
    %1603 = vmatmul.mubr.f32.gmra.mrb[0].mxu0 %v1501
    %v1604 = vpop.f32.mrb[0].mxu0
    %v1605 = vadd.f32 %v1477, %v1604
    %v1606 = vpop.f32.mrb[0].mxu0
    %1607 = vdwg.mxu0
    %1608 = vst [vmem:[#allocation5] sm:$0xff] %v1570
    %1609 = vst [vmem:[#allocation5 + $0x8] sm:$0xff] %v1575
    %1610 = vst [vmem:[#allocation5 + $0x10] sm:$0xff] %v1580
    %1611 = vst [vmem:[#allocation5 + $0x18] sm:$0xff] %v1585
    %1612 = vst [vmem:[#allocation5 + $0x20] sm:$0xff] %v1590
    %1613 = vst [vmem:[#allocation5 + $0x28] sm:$0xff] %v1595
    %1614 = vst [vmem:[#allocation5 + $0x30] sm:$0xff] %v1600
    %1615 = vst [vmem:[#allocation5 + $0x38] sm:$0xff] %v1605
    // Predicated region
    $region34: #{tpu_custom_call.1} parent=1 // pred_check
      _
    $region35: #{tpu_custom_call.1} parent=1 // pred_check_branch
      %1617 = sbr.rel (0) target = $region37
    $region36: #{tpu_custom_call.1} parent=1 // pred_region
      %s1619 = ssub.s32 1024, 1024
      %1620 = vsyncadd [#allocation4], %s1619
      %s1621 = sshll.u32 [#allocation5], 4
      %s1622 = int_to_ptr.vmem [resolvable:$true] %s1621
      %1627 = dma.vmem_to_hbm [thread:$0]  %s1622, 1024, %s7, [#allocation4], 128, 128, 8
    $region37: #{tpu_custom_call.1} parent=1 // pred_fallthru
      _
    // Predicated region
    $region38: #{tpu_custom_call.1} parent=1 // pred_check
      _
    $region39: #{tpu_custom_call.1} parent=1 // pred_check_branch
      %1629 = sbr.rel (0) target = $region41
    $region40: #{tpu_custom_call.1} parent=1 // pred_region
      %1630 = dma.done [#allocation4], 1024
    $region41: #{tpu_custom_call.1} parent=1 // pred_fallthru
      _
    %1631 = vsyncpa [#allocation3], 1
    %1632 = vsyncpa [#allocation4], 1

</llo_original>
